<compile_context>
chip_gen: v7x
topology: tpu7x:2x2x1
jax: 0.10.0
libtpu: 0.0.40
codegen_flags: <defaults>
</compile_context>

<pallas_src>
import math

import jax
import jax.numpy as jnp
from jax.experimental import pallas as pl
from jax.experimental.pallas import tpu as pltpu


def _round_up(x: int, m: int) -> int:
    return (x + m - 1) // m * m


def _numerical_embedder_kernel(x_ref, sel_ref, w_ref, b_ref, o_ref):
    """out = (x @ sel) * w + b on one (tile_b, tile_n*Dp) output tile.

    x_ref:   (tile_b, tile_n)     raw numerical features (batch/feature tile)
    sel_ref: (tile_n, tile_n*Dp)  0/1 replication matrix (VMEM resident)
    w_ref:   (1, tile_n*Dp)       flattened weights for this feature tile
    b_ref:   (1, tile_n*Dp)       flattened biases  for this feature tile
    o_ref:   (tile_b, tile_n*Dp)  lane-dense output tile
    """
    x = x_ref[...].astype(jnp.float32)
    # Replicate each feature across its Dp output lanes with a one-hot matmul
    # on the otherwise-idle MXU.  precision=HIGHEST is required: the default
    # f32 MXU mode is a single bf16 pass and would truncate x's mantissa
    # (~1e-3 rel. error); with a 0/1 matrix HIGHEST is exact and still cheap.
    xf = jnp.dot(
        x,
        sel_ref[...],
        preferred_element_type=jnp.float32,
        precision=jax.lax.Precision.HIGHEST,
    )
    w = w_ref[...].astype(jnp.float32)   # (1, tile_n*Dp): broadcast over sublanes
    b = b_ref[...].astype(jnp.float32)
    # Single fused VPU mul-add; hides entirely under the output DMA.
    o_ref[...] = (xf * w + b).astype(o_ref.dtype)


def _pick_nd_padding(N: int, D: int):
    """Pick (Np, Dp) >= (N, D) so the flat minor dim Np*Dp is a multiple of 128
    (full-width vst, contiguous output DMA).  If that would inflate the written
    bytes by more than ~25%, keep (N, D) and accept masked stores rather than
    extra HBM write traffic (the kernel is write-bound)."""
    best = None
    for Np in sorted({N, _round_up(N, 8)}):
        step = 128 // math.gcd(Np, 128)
        Dp = _round_up(D, step)
        if best is None or Np * Dp < best[0] * best[1]:
            best = (Np, Dp)
    Np, Dp = best
    if Np * Dp * 4 > N * D * 5:  # > 25% inflation of written bytes
        return N, D
    return Np, Dp


def numerical_embedder(x, weights, biases, *, tile_b=None, out_dtype=None):
    """out[b, n, d] = x[b, n] * weights[n, d] + biases[n, d].

    Pass out_dtype=jnp.bfloat16 when the consumer is bf16: the kernel is
    HBM-write-bound, so bf16 output roughly halves wall time (FMA stays f32).
    """
    B, N = x.shape
    Nw, D = weights.shape
    assert N == Nw, "num_numerical_types mismatch"
    assert biases.shape == (N, D), "biases shape mismatch"

    if out_dtype is None:
        out_dtype = jnp.promote_types(
            x.dtype, jnp.promote_types(weights.dtype, biases.dtype)
        )
    out_itemsize = jnp.dtype(out_dtype).itemsize
    x_itemsize = jnp.dtype(x.dtype).itemsize
    p_itemsize = jnp.dtype(weights.dtype).itemsize

    # ---- feature tiling / padding ---------------------------------------
    # The replication matrix costs tile_n^2 * Dp * 4 bytes of resident VMEM.
    # For large N we add a feature grid axis; the feature tile must then be a
    # multiple of 128 so x's block minor dim stays layout-legal.
    SEL_CAP = 4 << 20
    if N > 256 and N * N * D * 4 > SEL_CAP:
        tile_n = 128
        for cand in (512, 384, 256):
            if cand <= N and cand * cand * D * 4 <= SEL_CAP:
                tile_n = cand
                break
        Np = _round_up(N, tile_n)
        Dp = D  # tile_n is a multiple of 128 -> tile_n*Dp % 128 == 0 already
        # NOTE: for very large D the matmul-replication trick itself gets
        # VMEM-expensive (sel ~ tile_n^2*D); such shapes would want a
        # different replication scheme.
    else:
        Np, Dp = _pick_nd_padding(N, D)
        tile_n = Np
    n_feat_tiles = Np // tile_n
    blk_cols = tile_n * Dp

    # ---- batch tiling under an explicit VMEM plan ------------------------
    VMEM_LIMIT = 48 << 20   # explicit scoped-VMEM limit (fits v5e/v6e/v7x physical VMEM)
    VMEM_BUDGET = 40 << 20  # what we plan to use; headroom under the limit
    sel_bytes = 2 * tile_n * blk_cols * 4       # budgeted double-buffered (worst case)
    wb_bytes = 2 * 2 * blk_cols * p_itemsize
    per_row = 2 * blk_cols * out_itemsize + 2 * tile_n * x_itemsize
    b8 = _round_up(max(B, 1), 8)

    if tile_b is None:
        # ~8 MiB output tile: big enough to hide the ~0.35 us per-grid-step
        # overhead even at v7x's ~3.2 TB/s HBM; also fine on v5e/v6e.
        target_out_tile = 8 << 20
        tile_b = max(8, (target_out_tile // max(blk_cols * out_itemsize, 1)) // 8 * 8)
        # Keep >= 4 batch grid steps when the batch allows so the "parallel"
        # batch axis actually gives each of v7x's 2 TensorCores several tiles.
        if b8 >= 32:
            tile_b = min(tile_b, max(8, (b8 // 4) // 8 * 8))
    # Clamp to the VMEM budget and to the (padded) batch; keep sublane-aligned.
    max_rows = max(8, ((VMEM_BUDGET - sel_bytes - wb_bytes) // max(per_row, 1)) // 8 * 8)
    tile_b = max(8, min(tile_b, max_rows, b8) // 8 * 8)

    Bp = _round_up(B, tile_b)

    # ---- padded operands --------------------------------------------------
    x2 = x
    if (Bp, Np) != (B, N):
        x2 = jnp.pad(x, ((0, Bp - B), (0, Np - N)))
    wp = weights if (Np, Dp) == (N, D) else jnp.pad(weights, ((0, Np - N), (0, Dp - D)))
    bp = biases if (Np, Dp) == (N, D) else jnp.pad(biases, ((0, Np - N), (0, Dp - D)))
    wf = wp.reshape(1, Np * Dp)
    bf = bp.reshape(1, Np * Dp)

    # One-hot replication matrix for ONE feature tile: sel[n, n*Dp + d] = 1.
    # The diagonal block is identical for every feature tile, so a single copy
    # stays VMEM-resident across the whole grid.
    col_feat = jnp.arange(blk_cols, dtype=jnp.int32) // Dp
    sel = (col_feat[None, :] == jnp.arange(tile_n, dtype=jnp.int32)[:, None]).astype(
        jnp.float32
    )

    # Advisory cost estimate so XLA can schedule around this mem-bound call.
    flops = 2 * Bp * Np * tile_n * Dp + 2 * Bp * Np * Dp
    bytes_accessed = (
        Bp * Np * x_itemsize
        + int(sel.size) * 4
        + (int(wf.size) + int(bf.size)) * p_itemsize
        + Bp * Np * Dp * out_itemsize
    )
    cost = pl.CostEstimate(
        flops=int(flops), transcendentals=0, bytes_accessed=int(bytes_accessed)
    )

    grid = (Bp // tile_b, n_feat_tiles)

    def _build(single_buffer_consts: bool):
        # Single-buffer blocks whose index_map is constant over the grid
        # (halves their VMEM footprint -> larger batch tiles).
        const_mode = {"pipeline_mode": pl.Buffered(1)} if single_buffer_consts else {}
        wb_mode = const_mode if n_feat_tiles == 1 else {}
        in_specs = [
            pl.BlockSpec((tile_b, tile_n), lambda i, j: (i, j)),                  # x
            pl.BlockSpec((tile_n, blk_cols), lambda i, j: (0, 0), **const_mode),  # sel
            pl.BlockSpec((1, blk_cols), lambda i, j: (0, j), **wb_mode),          # weights
            pl.BlockSpec((1, blk_cols), lambda i, j: (0, j), **wb_mode),          # biases
        ]
        return pl.pallas_call(
            _numerical_embedder_kernel,
            out_shape=jax.ShapeDtypeStruct((Bp, Np * Dp), out_dtype),
            grid=grid,
            in_specs=in_specs,
            out_specs=pl.BlockSpec((tile_b, blk_cols), lambda i, j: (i, j)),
            compiler_params=pltpu.CompilerParams(
                dimension_semantics=("parallel", "parallel"),
                vmem_limit_bytes=VMEM_LIMIT,
            ),
            cost_estimate=cost,
        )

    try:
        out_flat = _build(True)(x2, sel, wf, bf)
    except Exception:
        # Fallback for Pallas builds without BlockSpec(pipeline_mode=...):
        # default double-buffered resident blocks (correct, a bit more VMEM).
        out_flat = _build(False)(x2, sel, wf, bf)

    # Drop batch/feature/dim padding and restore the (B, N, D) view.
    out = out_flat[:B].reshape(B, Np, Dp)
    if (Np, Dp) != (N, D):
        out = out[:, :N, :D]
    return out


if __name__ == "__main__":
    # Small shapes consistent with the module's forward (x: (B, N); dim=D).
    # B deliberately not a multiple of the tile to exercise the padding path;
    # tile_b=8 forces a multi-step pipelined grid even at this tiny size.
    B, N, D = 30, 8, 32

    key = jax.random.PRNGKey(0)
    kx, kw, kb = jax.random.split(key, 3)

    x = jax.random.normal(kx, (B, N), dtype=jnp.float32)
    weights = jax.random.normal(kw, (N, D), dtype=jnp.float32)  # torch.randn-style init
    biases = jax.random.normal(kb, (N, D), dtype=jnp.float32)

    out = numerical_embedder(x, weights, biases, tile_b=8)
    out = jax.block_until_ready(out)

    # Pure-JAX reference check.
    ref = x[:, :, None] * weights[None, :, :] + biases[None, :, :]
    assert out.shape == (B, N, D)
    assert out.dtype == ref.dtype
    assert jnp.allclose(out, ref, atol=1e-6, rtol=1e-6)

    print("KERNEL_OK")
</pallas_src>

<mosaic_0001>
module attributes {stable_mosaic.version = 11 : i64} {
  func.func @_numerical_embedder_kernel(%arg0: i32, %arg1: i32, %arg2: memref<8x8xf32, #tpu.memory_space<vmem>>, %arg3: memref<8x256xf32, #tpu.memory_space<vmem>>, %arg4: memref<1x256xf32, #tpu.memory_space<vmem>>, %arg5: memref<1x256xf32, #tpu.memory_space<vmem>>, %arg6: memref<8x256xf32, #tpu.memory_space<vmem>>) attributes {dimension_semantics = [#tpu.dimension_semantics<parallel>, #tpu.dimension_semantics<parallel>], iteration_bounds = array<i64: 4, 1>, scalar_prefetch = 0 : i64, scratch_operands = 0 : i64, tpu.core_type = #tpu.core_type<tc>, window_params = [{transform_indices = @transform_0, window_bounds = array<i64: 8, 8>}, {pipeline_mode = #tpu.pipeline_mode<synchronous>, transform_indices = @transform_1, window_bounds = array<i64: 8, 256>}, {pipeline_mode = #tpu.pipeline_mode<synchronous>, transform_indices = @transform_2, window_bounds = array<i64: 1, 256>}, {pipeline_mode = #tpu.pipeline_mode<synchronous>, transform_indices = @transform_3, window_bounds = array<i64: 1, 256>}, {transform_indices = @transform_4, window_bounds = array<i64: 8, 256>}]} {
    %c0 = arith.constant 0 : index
    %c0_0 = arith.constant 0 : index
    %0 = vector.load %arg2[%c0, %c0_0] : memref<8x8xf32, #tpu.memory_space<vmem>>, vector<8x8xf32>
    %c0_1 = arith.constant 0 : index
    %c0_2 = arith.constant 0 : index
    %1 = vector.load %arg3[%c0_1, %c0_2] : memref<8x256xf32, #tpu.memory_space<vmem>>, vector<8x256xf32>
    %cst = arith.constant dense<0.000000e+00> : vector<8x256xf32>
    %2 = tpu.matmul %0, %1, %cst {dimension_numbers = #tpu.dot_dimension_numbers<[1], [0], [0], [1], [0, 0, 1, 1], [], []>, precision = #tpu.contract_precision<fp32>} : vector<8x8xf32>, vector<8x256xf32>, vector<8x256xf32> -> vector<8x256xf32>
    %c0_3 = arith.constant 0 : index
    %c0_4 = arith.constant 0 : index
    %3 = vector.load %arg4[%c0_3, %c0_4] : memref<1x256xf32, #tpu.memory_space<vmem>>, vector<1x256xf32>
    %c0_5 = arith.constant 0 : index
    %c0_6 = arith.constant 0 : index
    %4 = vector.load %arg5[%c0_5, %c0_6] : memref<1x256xf32, #tpu.memory_space<vmem>>, vector<1x256xf32>
    %5 = vector.broadcast %3 : vector<1x256xf32> to vector<8x256xf32>
    %6 = arith.mulf %2, %5 : vector<8x256xf32>
    %7 = vector.broadcast %4 : vector<1x256xf32> to vector<8x256xf32>
    %8 = arith.addf %6, %7 : vector<8x256xf32>
    %c0_7 = arith.constant 0 : index
    %c0_8 = arith.constant 0 : index
    %9 = vector.load %arg6[%c0_7, %c0_8] : memref<8x256xf32, #tpu.memory_space<vmem>>, vector<8x256xf32>
    tpu.vector_store %arg6[%c0_7, %c0_8], %8 {strides = array<i32>} : memref<8x256xf32, #tpu.memory_space<vmem>>, vector<8x256xf32>,
    return
  }
  func.func @transform_0(%arg0: i32, %arg1: i32) -> (i32, i32) {
    %c0_i32 = arith.constant 0 : i32
    return %arg0, %arg1 : i32, i32
  }
  func.func @transform_1(%arg0: i32, %arg1: i32) -> (i32, i32) {
    %c0_i32 = arith.constant 0 : i32
    %c0_i32_0 = arith.constant 0 : i32
    %c0_i32_1 = arith.constant 0 : i32
    return %c0_i32, %c0_i32_0 : i32, i32
  }
  func.func @transform_2(%arg0: i32, %arg1: i32) -> (i32, i32) {
    %c0_i32 = arith.constant 0 : i32
    %c0_i32_0 = arith.constant 0 : i32
    return %c0_i32, %arg1 : i32, i32
  }
  func.func @transform_3(%arg0: i32, %arg1: i32) -> (i32, i32) {
    %c0_i32 = arith.constant 0 : i32
    %c0_i32_0 = arith.constant 0 : i32
    return %c0_i32, %arg1 : i32, i32
  }
  func.func @transform_4(%arg0: i32, %arg1: i32) -> (i32, i32) {
    %c0_i32 = arith.constant 0 : i32
    return %arg0, %arg1 : i32, i32
  }
}

module attributes {stable_mosaic.version = 11 : i64} {
  func.func @_numerical_embedder_kernel(%arg0: i32, %arg1: i32, %arg2: memref<8x8xf32, #tpu.memory_space<vmem>>, %arg3: memref<8x256xf32, #tpu.memory_space<vmem>>, %arg4: memref<1x256xf32, #tpu.memory_space<vmem>>, %arg5: memref<1x256xf32, #tpu.memory_space<vmem>>, %arg6: memref<8x256xf32, #tpu.memory_space<vmem>>) attributes {dimension_semantics = [#tpu.dimension_semantics<parallel>, #tpu.dimension_semantics<parallel>], iteration_bounds = array<i64: 4, 1>, scalar_prefetch = 0 : i64, scratch_operands = 0 : i64, tpu.core_type = #tpu.core_type<tc>, window_params = [{transform_indices = @transform_0, window_bounds = array<i64: 8, 8>}, {pipeline_mode = #tpu.pipeline_mode<synchronous>, transform_indices = @transform_1, window_bounds = array<i64: 8, 256>}, {transform_indices = @transform_2, window_bounds = array<i64: 1, 256>}, {transform_indices = @transform_3, window_bounds = array<i64: 1, 256>}, {transform_indices = @transform_4, window_bounds = array<i64: 8, 256>}]} {
    %c0 = arith.constant 0 : index
    %c0_0 = arith.constant 0 : index
    %0 = vector.load %arg2[%c0, %c0_0] : memref<8x8xf32, #tpu.memory_space<vmem>>, vector<8x8xf32>
    %c0_1 = arith.constant 0 : index
    %c0_2 = arith.constant 0 : index
    %1 = vector.load %arg3[%c0_1, %c0_2] : memref<8x256xf32, #tpu.memory_space<vmem>>, vector<8x256xf32>
    %cst = arith.constant dense<0.000000e+00> : vector<8x256xf32>
    %2 = tpu.matmul %0, %1, %cst {dimension_numbers = #tpu.dot_dimension_numbers<[1], [0], [0], [1], [0, 0, 1, 1], [], []>, precision = #tpu.contract_precision<fp32>} : vector<8x8xf32>, vector<8x256xf32>, vector<8x256xf32> -> vector<8x256xf32>
    %c0_3 = arith.constant 0 : index
    %c0_4 = arith.constant 0 : index
    %3 = vector.load %arg4[%c0_3, %c0_4] : memref<1x256xf32, #tpu.memory_space<vmem>>, vector<1x256xf32>
    %c0_5 = arith.constant 0 : index
    %c0_6 = arith.constant 0 : index
    %4 = vector.load %arg5[%c0_5, %c0_6] : memref<1x256xf32, #tpu.memory_space<vmem>>, vector<1x256xf32>
    %5 = vector.broadcast %3 : vector<1x256xf32> to vector<8x256xf32>
    %6 = arith.mulf %2, %5 : vector<8x256xf32>
    %7 = vector.broadcast %4 : vector<1x256xf32> to vector<8x256xf32>
    %8 = arith.addf %6, %7 : vector<8x256xf32>
    %c0_7 = arith.constant 0 : index
    %c0_8 = arith.constant 0 : index
    %9 = vector.load %arg6[%c0_7, %c0_8] : memref<8x256xf32, #tpu.memory_space<vmem>>, vector<8x256xf32>
    tpu.vector_store %arg6[%c0_7, %c0_8], %8 {strides = array<i32>} : memref<8x256xf32, #tpu.memory_space<vmem>>, vector<8x256xf32>,
    return
  }
  func.func @transform_0(%arg0: i32, %arg1: i32) -> (i32, i32) {
    %c0_i32 = arith.constant 0 : i32
    return %arg0, %arg1 : i32, i32
  }
  func.func @transform_1(%arg0: i32, %arg1: i32) -> (i32, i32) {
    %c0_i32 = arith.constant 0 : i32
    %c0_i32_0 = arith.constant 0 : i32
    %c0_i32_1 = arith.constant 0 : i32
    return %c0_i32, %c0_i32_0 : i32, i32
  }
  func.func @transform_2(%arg0: i32, %arg1: i32) -> (i32, i32) {
    %c0_i32 = arith.constant 0 : i32
    %c0_i32_0 = arith.constant 0 : i32
    return %c0_i32, %arg1 : i32, i32
  }
  func.func @transform_3(%arg0: i32, %arg1: i32) -> (i32, i32) {
    %c0_i32 = arith.constant 0 : i32
    %c0_i32_0 = arith.constant 0 : i32
    return %c0_i32, %arg1 : i32, i32
  }
  func.func @transform_4(%arg0: i32, %arg1: i32) -> (i32, i32) {
    %c0_i32 = arith.constant 0 : i32
    return %arg0, %arg1 : i32, i32
  }
}

</mosaic_0001>

<llo_original>
// kernel: tpu_custom_call.1
$region0: #{tpu_custom_call.1}
  #allocation0 [shape = 'u32[]', space=smem, size = 0x4, offset = 0x4, fixed_abs, tag = 'smem constant byte address 0x4 - core index']
  #allocation1 [shape = 'u32[144,128]{1,0:T(1,128)}', space=vmem, size = 0x12000, scoped, tag = 'internal scratch']
  %s0 = inlined_call_operand.vmem [shape: f32[32,8], index: 0, kind: input, shape index: {}]
  %s1 = inlined_call_operand.vmem [shape: f32[8,256], index: 1, kind: input, shape index: {}]
  %s2 = inlined_call_operand.vmem [shape: f32[1,256], index: 2, kind: input, shape index: {}]
  %s3 = inlined_call_operand.vmem [shape: f32[1,256], index: 3, kind: input, shape index: {}]
  %s4 = inlined_call_operand.hbm [shape: f32[32,256], index: 4, kind: output, shape index: {}]
  %s5 = sld [smem:[#allocation0]]
  $region49: #{tpu_custom_call.1} parent=0
    _
  %s7 = ssub.s32 1, %s5
  %s8 = scalar_select 0, %s7, %s5
  $region1: #{tpu_custom_call.1} parent=0
    #allocation2 [shape = 'u8[16384]{0}', space=vmem, size = 0x4000, scoped, tag = 'output window, operand 0']
    #allocation3 [shape = 's32[2]{0}', space=sflag, size = 0x8, scoped, tag = 'scoped memory for tpu_custom_call.1']
    %9 = vsyncpa [#allocation3], 0
    %s10 = scalar_lea.sflag [#allocation3], 1
    %11 = vsyncpa %s10, 0
    loop: start=0, step=1, limit=6
    $region2: #{tpu_custom_call.1} parent=1 // loop_pre_header
      _
    $region3: #{tpu_custom_call.1} parent=1 // loop_header
      %s13 = sphi 0, %s17
      %p14 = scmp.ge.s32.totalorder %s13, 6
      %s20 = sphi 0, %s32
      %s21 = sphi 0, %s28
      %s22 = sphi 0, %s20
      %s23 = sphi 0, %s21
      %s24 = sphi 0, %s22
      %s25 = sphi 0, %s23
      %s37 = sphi 0, %s39
      %s40 = sphi 0, %s37
      %s41 = sphi 0, %s40
      %s57 = sphi 0, %s41
      %s61 = sphi 0, %s61
      %s63 = sphi 0, %s61
      %s64 = sphi 0, %s63
      %s78 = sphi 0, %s64
      %s84 = sphi 0, %s86
      %s87 = sphi 0, %s84
      %s88 = sphi 0, %s87
      %s104 = sphi 0, %s88
      %s110 = sphi 0, %s112
      %s113 = sphi 0, %s110
      %s114 = sphi 0, %s113
      %s130 = sphi 0, %s114
      %s138 = sphi 0, %s140
      %s141 = sphi 0, %s138
      %s142 = sphi 0, %s141
      %s158 = sphi 0, %s142
    $region4: #{tpu_custom_call.1} parent=1 // loop_header_branch
      %16 = sbr.rel (%p14) target = $region8
    $region5: #{tpu_custom_call.1} parent=1 // loop_body
      %s18 = ssub.s32 %s13, 1
      %s19 = ssub.s32 %s13, 2
      %s26 = sadd.s32 1, %s21
      %p27 = scmp.ge.s32.totalorder %s26, 1
      %s28 = scalar_select %p27, 0, %s26
      %s29 = sadd.s32 1, %s20
      %s30 = scalar_select %p27, %s29, %s20
      %p31 = scmp.ge.s32.totalorder %s30, 4
      %s32 = scalar_select %p31, 0, %s30
      %s33 = ssub.s32 %s20, %s32
      %s34 = ssub.s32 %s21, %s28
      %s35 = sor.u32 %s33, %s34
      %p36 = scmp.eq.s32.totalorder %s35, 0
      %s38 = sadd.s32 %s37, 1
      %s39 = scalar_select %p36, %s37, %s38
      %p42 = pneg %p36
      %p43 = scmp.eq.s32.totalorder %s13, 3
      %p44 = por %p42, %p43
      %p45 = scmp.ne.s32.totalorder %s37, %s40
      %p46 = scmp.eq.s32.totalorder %s13, 0
      %p47 = por %p45, %p46
      %p48 = scmp.ne.s32.totalorder %s37, %s40
      %p49 = scmp.eq.s32.totalorder %s18, 3
      %p50 = por %p48, %p49
      %p51 = scmp.ne.s32.totalorder %s40, %s41
      %p52 = scmp.eq.s32.totalorder %s18, 0
      %p53 = por %p51, %p52
      %p54 = scmp.ne.s32.totalorder %s40, %s41
      %p55 = scmp.eq.s32.totalorder %s19, 3
      %p56 = por %p54, %p55
      %p58 = scmp.ne.s32.totalorder %s41, %s57
      %p59 = scmp.eq.s32.totalorder %s19, 0
      %p60 = por %p58, %p59
      %s62 = sadd.s32 %s61, 1
      %p65 = scmp.eq.s32.totalorder %s13, 3
      %p66 = scmp.ne.s32.totalorder %s61, %s63
      %p67 = scmp.eq.s32.totalorder %s13, 0
      %p68 = por %p66, %p67
      %p69 = scmp.ne.s32.totalorder %s61, %s63
      %p70 = scmp.eq.s32.totalorder %s18, 3
      %p71 = por %p69, %p70
      %p72 = scmp.ne.s32.totalorder %s63, %s64
      %p73 = scmp.eq.s32.totalorder %s18, 0
      %p74 = por %p72, %p73
      %p75 = scmp.ne.s32.totalorder %s63, %s64
      %p76 = scmp.eq.s32.totalorder %s19, 3
      %p77 = por %p75, %p76
      %p79 = scmp.ne.s32.totalorder %s64, %s78
      %p80 = scmp.eq.s32.totalorder %s19, 0
      %p81 = por %p79, %p80
      %s82 = ssub.s32 %s21, %s28
      %p83 = scmp.eq.s32.totalorder %s82, 0
      %s85 = sadd.s32 %s84, 1
      %s86 = scalar_select %p83, %s84, %s85
      %p89 = pneg %p83
      %p90 = scmp.eq.s32.totalorder %s13, 3
      %p91 = por %p89, %p90
      %p92 = scmp.ne.s32.totalorder %s84, %s87
      %p93 = scmp.eq.s32.totalorder %s13, 0
      %p94 = por %p92, %p93
      %p95 = scmp.ne.s32.totalorder %s84, %s87
      %p96 = scmp.eq.s32.totalorder %s18, 3
      %p97 = por %p95, %p96
      %p98 = scmp.ne.s32.totalorder %s87, %s88
      %p99 = scmp.eq.s32.totalorder %s18, 0
      %p100 = por %p98, %p99
      %p101 = scmp.ne.s32.totalorder %s87, %s88
      %p102 = scmp.eq.s32.totalorder %s19, 3
      %p103 = por %p101, %p102
      %p105 = scmp.ne.s32.totalorder %s88, %s104
      %p106 = scmp.eq.s32.totalorder %s19, 0
      %p107 = por %p105, %p106
      %s108 = ssub.s32 %s21, %s28
      %p109 = scmp.eq.s32.totalorder %s108, 0
      %s111 = sadd.s32 %s110, 1
      %s112 = scalar_select %p109, %s110, %s111
      %p115 = pneg %p109
      %p116 = scmp.eq.s32.totalorder %s13, 3
      %p117 = por %p115, %p116
      %p118 = scmp.ne.s32.totalorder %s110, %s113
      %p119 = scmp.eq.s32.totalorder %s13, 0
      %p120 = por %p118, %p119
      %p121 = scmp.ne.s32.totalorder %s110, %s113
      %p122 = scmp.eq.s32.totalorder %s18, 3
      %p123 = por %p121, %p122
      %p124 = scmp.ne.s32.totalorder %s113, %s114
      %p125 = scmp.eq.s32.totalorder %s18, 0
      %p126 = por %p124, %p125
      %p127 = scmp.ne.s32.totalorder %s113, %s114
      %p128 = scmp.eq.s32.totalorder %s19, 3
      %p129 = por %p127, %p128
      %p131 = scmp.ne.s32.totalorder %s114, %s130
      %p132 = scmp.eq.s32.totalorder %s19, 0
      %p133 = por %p131, %p132
      %s134 = ssub.s32 %s20, %s32
      %s135 = ssub.s32 %s21, %s28
      %s136 = sor.u32 %s134, %s135
      %p137 = scmp.eq.s32.totalorder %s136, 0
      %s139 = sadd.s32 %s138, 1
      %s140 = scalar_select %p137, %s138, %s139
      %p143 = pneg %p137
      %p144 = scmp.eq.s32.totalorder %s13, 3
      %p145 = por %p143, %p144
      %p146 = scmp.ne.s32.totalorder %s138, %s141
      %p147 = scmp.eq.s32.totalorder %s13, 0
      %p148 = por %p146, %p147
      %p149 = scmp.ne.s32.totalorder %s138, %s141
      %p150 = scmp.eq.s32.totalorder %s18, 3
      %p151 = por %p149, %p150
      %p152 = scmp.ne.s32.totalorder %s141, %s142
      %p153 = scmp.eq.s32.totalorder %s18, 0
      %p154 = por %p152, %p153
      %p155 = scmp.ne.s32.totalorder %s141, %s142
      %p156 = scmp.eq.s32.totalorder %s19, 3
      %p157 = por %p155, %p156
      %p159 = scmp.ne.s32.totalorder %s142, %s158
      %p160 = scmp.eq.s32.totalorder %s19, 0
      %p161 = por %p159, %p160
      %p162 = scmp.le.s32.totalorder 1, %s13
      %p163 = scmp.lt.s32.totalorder %s13, 5
      %p164 = pnand %p162, %p163
      %p165 = pneg %p164
      // Predicated region
      $region9: #{tpu_custom_call.1} parent=5 // pred_check
        _
      $region10: #{tpu_custom_call.1} parent=5 // pred_check_branch
        %167 = sbr.rel (%p164) target = $region12
      $region11: #{tpu_custom_call.1} parent=5 // pred_region
        %s168 = ssub.s32 %s13, 1
        // Predicated region
        $region13: #{tpu_custom_call.1} parent=11 // pred_check
          %p169 = pneg %p74
        $region14: #{tpu_custom_call.1} parent=11 // pred_check_branch
          %171 = sbr.rel (%p169) target = $region16
        $region15: #{tpu_custom_call.1} parent=11 // pred_region
          _
        $region16: #{tpu_custom_call.1} parent=11 // pred_fallthru
          _
        // Predicated region
        $region17: #{tpu_custom_call.1} parent=11 // pred_check
          %p172 = pneg %p100
        $region18: #{tpu_custom_call.1} parent=11 // pred_check_branch
          %174 = sbr.rel (%p172) target = $region20
        $region19: #{tpu_custom_call.1} parent=11 // pred_region
          %s175 = smul.u32 2, %s23
          %p176 = scmp.lt.s32.totalorder %s175, 1
          %s177 = scalar_select %p176, %s175, 1
          %s178 = scalar_lea.vmem %s2, %s177
          %s179 = smul.u32 2, %s23
        $region20: #{tpu_custom_call.1} parent=11 // pred_fallthru
          _
        // Predicated region
        $region21: #{tpu_custom_call.1} parent=11 // pred_check
          %p180 = pneg %p126
        $region22: #{tpu_custom_call.1} parent=11 // pred_check_branch
          %182 = sbr.rel (%p180) target = $region24
        $region23: #{tpu_custom_call.1} parent=11 // pred_region
          %s183 = smul.u32 2, %s23
          %p184 = scmp.lt.s32.totalorder %s183, 1
          %s185 = scalar_select %p184, %s183, 1
          %s186 = scalar_lea.vmem %s3, %s185
          %s187 = smul.u32 2, %s23
        $region24: #{tpu_custom_call.1} parent=11 // pred_fallthru
          _
      $region12: #{tpu_custom_call.1} parent=5 // pred_fallthru
        _
      %p188 = scmp.lt.s32.totalorder %s13, 4
      // Predicated region
      $region25: #{tpu_custom_call.1} parent=5 // pred_check
        %p189 = pneg %p188
      $region26: #{tpu_custom_call.1} parent=5 // pred_check_branch
        %191 = sbr.rel (%p189) target = $region28
      $region27: #{tpu_custom_call.1} parent=5 // pred_region
        // Predicated region
        $region29: #{tpu_custom_call.1} parent=27 // pred_check
          %p192 = pneg %p47
        $region30: #{tpu_custom_call.1} parent=27 // pred_check_branch
          %194 = sbr.rel (%p192) target = $region32
        $region31: #{tpu_custom_call.1} parent=27 // pred_region
          %p195 = scmp.lt.s32.totalorder %s20, 3
          %s196 = scalar_select %p195, %s20, 3
          %p197 = scmp.lt.s32.totalorder %s21, 0
          %s198 = scalar_select %p197, %s21, 0
          %s199 = sadd.s32 %s198, %s196
          %s200 = smul.addr %s199, 8
          %s201 = scalar_lea.vmem %s0, %s200
        $region32: #{tpu_custom_call.1} parent=27 // pred_fallthru
          _
      $region28: #{tpu_custom_call.1} parent=5 // pred_fallthru
        _
      %p202 = scmp.le.s32.totalorder 1, %s13
      %p203 = scmp.lt.s32.totalorder %s13, 5
      %p204 = pnand %p202, %p203
      %p205 = pneg %p204
      // Predicated region
      $region33: #{tpu_custom_call.1} parent=5 // pred_check
        _
      $region34: #{tpu_custom_call.1} parent=5 // pred_check_branch
        %207 = sbr.rel (%p204) target = $region36
      $region35: #{tpu_custom_call.1} parent=5 // pred_region
        %s208 = ssub.s32 %s13, 1
        %p209 = scmp.lt.s32.totalorder %s22, 3
        %s210 = scalar_select %p209, %s22, 3
        %p211 = scmp.lt.s32.totalorder %s23, 0
        %s212 = scalar_select %p211, %s23, 0
        %s213 = sadd.s32 %s212, %s210
        %s214 = smul.addr %s213, 8
        %s215 = scalar_lea.vmem %s0, %s214
        %p216 = pneg %p53
        %p217 = pneg %p50
        %p218 = pneg %p74
        %p219 = pneg %p71
        %s220 = smul.u32 2, %s23
        %p221 = scmp.lt.s32.totalorder %s220, 1
        %s222 = scalar_select %p221, %s220, 1
        %s223 = scalar_lea.vmem %s2, %s222
        %p224 = pneg %p100
        %p225 = pneg %p97
        %s226 = smul.u32 2, %s23
        %p227 = scmp.lt.s32.totalorder %s226, 1
        %s228 = scalar_select %p227, %s226, 1
        %s229 = scalar_lea.vmem %s3, %s228
        %p230 = pneg %p126
        %p231 = pneg %p123
        %p232 = pneg %p154
        %p233 = pneg %p151
        %s234 = sand.u32 %s141, 1
        %s235 = scalar_lea.sflag [#allocation3], %s234
        %s236 = sand.u32 %s141, 1
        %s237 = smul.addr %s236, 16
        %s238 = scalar_lea.vmem [#allocation2], %s237
        %p239 = scmp.lt.s32.totalorder %s22, 3
        %s240 = scalar_select %p239, %s22, 3
        %p241 = scmp.lt.s32.totalorder %s23, 0
        %s242 = scalar_select %p241, %s23, 0
        %s243 = sadd.s32 %s242, %s240
        %s244 = smul.addr %s243, 8
        %s245 = scalar_lea.vmem %s0, %s244
        %s246 = smul.u32 2, %s23
        %p247 = scmp.lt.s32.totalorder %s246, 1
        %s248 = scalar_select %p247, %s246, 1
        %s249 = scalar_lea.vmem %s2, %s248
        %s250 = smul.u32 2, %s23
        %s251 = smul.u32 2, %s23
        %p252 = scmp.lt.s32.totalorder %s251, 1
        %s253 = scalar_select %p252, %s251, 1
        %s254 = scalar_lea.vmem %s3, %s253
        %s255 = smul.u32 2, %s23
        %s256 = smul.u32 2, %s23
        %v257 = vld [vmem:[%s245] sm:$0xff]
        %v258 = vld [vmem:[%s1] sm:$0xff]
        %v259 = vld [vmem:[%s1 + $0x8] sm:$0xff]
        %vm260 = vcmask 64512
        %v262 = vsel %vm260, %v257, 0
        %v264 = vand.u32 %v259, 4294901760
        %265 = vmatprep.subr.mxu0 %v264
        %v266 = vand.u32 %v258, 4294901760
        %267 = vmatpush1.msra.mxu0 %v266
        %268 = vmatprep.subr.mxu0 0.0
        %269 = vmatpush1.msra.mxu0 0.0
        %270 = vmatprep.subr.mxu0 0.0
        %271 = vmatpush1.msra.mxu0 0.0
        %272 = vmatprep.subr.mxu0 0.0
        %273 = vmatpush1.msra.mxu0 0.0
        %274 = vmatprep.subr.mxu0 0.0
        %275 = vmatpush1.msra.mxu0 0.0
        %276 = vmatprep.subr.mxu0 0.0
        %277 = vmatpush1.msra.mxu0 0.0
        %278 = vmatprep.subr.mxu0 0.0
        %279 = vmatpush1.msra.mxu0 0.0
        %280 = vmatprep.subr.mxu0 0.0
        %281 = vmatpush1.msra.mxu0 0.0
        %282 = vmatprep.subr.mxu0 0.0
        %283 = vmatpush1.msra.mxu0 0.0
        %284 = vmatprep.subr.mxu0 0.0
        %285 = vmatpush1.msra.mxu0 0.0
        %286 = vmatprep.subr.mxu0 0.0
        %287 = vmatpush1.msra.mxu0 0.0
        %288 = vmatprep.subr.mxu0 0.0
        %289 = vmatpush1.msra.mxu0 0.0
        %290 = vmatprep.subr.mxu0 0.0
        %291 = vmatpush1.msra.mxu0 0.0
        %292 = vmatprep.subr.mxu0 0.0
        %293 = vmatpush1.msra.mxu0 0.0
        %294 = vmatprep.subr.mxu0 0.0
        %295 = vmatpush1.msra.mxu0 0.0
        %296 = vmatprep.subr.mxu0 0.0
        %297 = vmatpush1.msra.mxu0 0.0
        %298 = vmatprep.subr.mxu0 0.0
        %299 = vmatpush1.msra.mxu0 0.0
        %300 = vmatprep.subr.mxu0 0.0
        %301 = vmatpush1.msra.mxu0 0.0
        %302 = vmatprep.subr.mxu0 0.0
        %303 = vmatpush1.msra.mxu0 0.0
        %304 = vmatprep.subr.mxu0 0.0
        %305 = vmatpush1.msra.mxu0 0.0
        %306 = vmatprep.subr.mxu0 0.0
        %307 = vmatpush1.msra.mxu0 0.0
        %308 = vmatprep.subr.mxu0 0.0
        %309 = vmatpush1.msra.mxu0 0.0
        %310 = vmatprep.subr.mxu0 0.0
        %311 = vmatpush1.msra.mxu0 0.0
        %312 = vmatprep.subr.mxu0 0.0
        %313 = vmatpush1.msra.mxu0 0.0
        %314 = vmatprep.subr.mxu0 0.0
        %315 = vmatpush1.msra.mxu0 0.0
        %316 = vmatprep.subr.mxu0 0.0
        %317 = vmatpush1.msra.mxu0 0.0
        %318 = vmatprep.subr.mxu0 0.0
        %319 = vmatpush1.msra.mxu0 0.0
        %320 = vmatprep.subr.mxu0 0.0
        %321 = vmatpush1.msra.mxu0 0.0
        %322 = vmatprep.subr.mxu0 0.0
        %323 = vmatpush1.msra.mxu0 0.0
        %324 = vmatprep.subr.mxu0 0.0
        %325 = vmatpush1.msra.mxu0 0.0
        %326 = vmatprep.subr.mxu0 0.0
        %327 = vmatpush1.msra.mxu0 0.0
        %328 = vmatprep.subr.mxu0 0.0
        %329 = vmatpush1.msra.mxu0 0.0
        %330 = vmatprep.mubr.f32.mxu0 0.0
        %v331 = vand.u32 %v262, 4294901760
        %v332 = vsub.f32 %v262, %v331
        %v333 = vand.u32 %v332, 4294901760
        %v334 = vsub.f32 %v332, %v333
        %v335 = vand.u32 %v334, 4294901760
        %336 = vmatmul.mubr.f32.gmra.mrb[0].mxu0 %v335
        %v337 = vpop.f32.mrb[0].mxu0
        %v338 = vadd.f32 0.0, %v337
        %v339 = vpop.f32.mrb[0].mxu0
        %v340 = vadd.f32 0.0, %v339
        %341 = vdwg.mxu0
        %v342 = vand.u32 %v259, 4294901760
        %v343 = vsub.f32 %v259, %v342
        %v344 = vand.u32 %v343, 4294901760
        %v345 = vsub.f32 %v343, %v344
        %v346 = vand.u32 %v345, 4294901760
        %347 = vmatprep.subr.mxu0 %v346
        %v348 = vand.u32 %v258, 4294901760
        %v349 = vsub.f32 %v258, %v348
        %v350 = vand.u32 %v349, 4294901760
        %v351 = vsub.f32 %v349, %v350
        %v352 = vand.u32 %v351, 4294901760
        %353 = vmatpush1.msra.mxu0 %v352
        %354 = vmatprep.subr.mxu0 0.0
        %355 = vmatpush1.msra.mxu0 0.0
        %356 = vmatprep.subr.mxu0 0.0
        %357 = vmatpush1.msra.mxu0 0.0
        %358 = vmatprep.subr.mxu0 0.0
        %359 = vmatpush1.msra.mxu0 0.0
        %360 = vmatprep.subr.mxu0 0.0
        %361 = vmatpush1.msra.mxu0 0.0
        %362 = vmatprep.subr.mxu0 0.0
        %363 = vmatpush1.msra.mxu0 0.0
        %364 = vmatprep.subr.mxu0 0.0
        %365 = vmatpush1.msra.mxu0 0.0
        %366 = vmatprep.subr.mxu0 0.0
        %367 = vmatpush1.msra.mxu0 0.0
        %368 = vmatprep.subr.mxu0 0.0
        %369 = vmatpush1.msra.mxu0 0.0
        %370 = vmatprep.subr.mxu0 0.0
        %371 = vmatpush1.msra.mxu0 0.0
        %372 = vmatprep.subr.mxu0 0.0
        %373 = vmatpush1.msra.mxu0 0.0
        %374 = vmatprep.subr.mxu0 0.0
        %375 = vmatpush1.msra.mxu0 0.0
        %376 = vmatprep.subr.mxu0 0.0
        %377 = vmatpush1.msra.mxu0 0.0
        %378 = vmatprep.subr.mxu0 0.0
        %379 = vmatpush1.msra.mxu0 0.0
        %380 = vmatprep.subr.mxu0 0.0
        %381 = vmatpush1.msra.mxu0 0.0
        %382 = vmatprep.subr.mxu0 0.0
        %383 = vmatpush1.msra.mxu0 0.0
        %384 = vmatprep.subr.mxu0 0.0
        %385 = vmatpush1.msra.mxu0 0.0
        %386 = vmatprep.subr.mxu0 0.0
        %387 = vmatpush1.msra.mxu0 0.0
        %388 = vmatprep.subr.mxu0 0.0
        %389 = vmatpush1.msra.mxu0 0.0
        %390 = vmatprep.subr.mxu0 0.0
        %391 = vmatpush1.msra.mxu0 0.0
        %392 = vmatprep.subr.mxu0 0.0
        %393 = vmatpush1.msra.mxu0 0.0
        %394 = vmatprep.subr.mxu0 0.0
        %395 = vmatpush1.msra.mxu0 0.0
        %396 = vmatprep.subr.mxu0 0.0
        %397 = vmatpush1.msra.mxu0 0.0
        %398 = vmatprep.subr.mxu0 0.0
        %399 = vmatpush1.msra.mxu0 0.0
        %400 = vmatprep.subr.mxu0 0.0
        %401 = vmatpush1.msra.mxu0 0.0
        %402 = vmatprep.subr.mxu0 0.0
        %403 = vmatpush1.msra.mxu0 0.0
        %404 = vmatprep.subr.mxu0 0.0
        %405 = vmatpush1.msra.mxu0 0.0
        %406 = vmatprep.subr.mxu0 0.0
        %407 = vmatpush1.msra.mxu0 0.0
        %408 = vmatprep.subr.mxu0 0.0
        %409 = vmatpush1.msra.mxu0 0.0
        %410 = vmatprep.subr.mxu0 0.0
        %411 = vmatpush1.msra.mxu0 0.0
        %412 = vmatprep.subr.mxu0 0.0
        %413 = vmatpush1.msra.mxu0 0.0
        %414 = vmatprep.subr.mxu0 0.0
        %415 = vmatpush1.msra.mxu0 0.0
        %416 = vmatprep.mubr.f32.mxu0 0.0
        %v417 = vand.u32 %v262, 4294901760
        %418 = vmatmul.mubr.f32.gmra.mrb[0].mxu0 %v417
        %v419 = vpop.f32.mrb[0].mxu0
        %v420 = vadd.f32 %v338, %v419
        %v421 = vpop.f32.mrb[0].mxu0
        %v422 = vadd.f32 %v340, %v421
        %423 = vdwg.mxu0
        %v424 = vand.u32 %v259, 4294901760
        %v425 = vsub.f32 %v259, %v424
        %426 = vmatprep.subr.mxu0 %v425
        %v427 = vand.u32 %v258, 4294901760
        %v428 = vsub.f32 %v258, %v427
        %429 = vmatpush1.msra.mxu0 %v428
        %430 = vmatprep.subr.mxu0 0.0
        %431 = vmatpush1.msra.mxu0 0.0
        %432 = vmatprep.subr.mxu0 0.0
        %433 = vmatpush1.msra.mxu0 0.0
        %434 = vmatprep.subr.mxu0 0.0
        %435 = vmatpush1.msra.mxu0 0.0
        %436 = vmatprep.subr.mxu0 0.0
        %437 = vmatpush1.msra.mxu0 0.0
        %438 = vmatprep.subr.mxu0 0.0
        %439 = vmatpush1.msra.mxu0 0.0
        %440 = vmatprep.subr.mxu0 0.0
        %441 = vmatpush1.msra.mxu0 0.0
        %442 = vmatprep.subr.mxu0 0.0
        %443 = vmatpush1.msra.mxu0 0.0
        %444 = vmatprep.subr.mxu0 0.0
        %445 = vmatpush1.msra.mxu0 0.0
        %446 = vmatprep.subr.mxu0 0.0
        %447 = vmatpush1.msra.mxu0 0.0
        %448 = vmatprep.subr.mxu0 0.0
        %449 = vmatpush1.msra.mxu0 0.0
        %450 = vmatprep.subr.mxu0 0.0
        %451 = vmatpush1.msra.mxu0 0.0
        %452 = vmatprep.subr.mxu0 0.0
        %453 = vmatpush1.msra.mxu0 0.0
        %454 = vmatprep.subr.mxu0 0.0
        %455 = vmatpush1.msra.mxu0 0.0
        %456 = vmatprep.subr.mxu0 0.0
        %457 = vmatpush1.msra.mxu0 0.0
        %458 = vmatprep.subr.mxu0 0.0
        %459 = vmatpush1.msra.mxu0 0.0
        %460 = vmatprep.subr.mxu0 0.0
        %461 = vmatpush1.msra.mxu0 0.0
        %462 = vmatprep.subr.mxu0 0.0
        %463 = vmatpush1.msra.mxu0 0.0
        %464 = vmatprep.subr.mxu0 0.0
        %465 = vmatpush1.msra.mxu0 0.0
        %466 = vmatprep.subr.mxu0 0.0
        %467 = vmatpush1.msra.mxu0 0.0
        %468 = vmatprep.subr.mxu0 0.0
        %469 = vmatpush1.msra.mxu0 0.0
        %470 = vmatprep.subr.mxu0 0.0
        %471 = vmatpush1.msra.mxu0 0.0
        %472 = vmatprep.subr.mxu0 0.0
        %473 = vmatpush1.msra.mxu0 0.0
        %474 = vmatprep.subr.mxu0 0.0
        %475 = vmatpush1.msra.mxu0 0.0
        %476 = vmatprep.subr.mxu0 0.0
        %477 = vmatpush1.msra.mxu0 0.0
        %478 = vmatprep.subr.mxu0 0.0
        %479 = vmatpush1.msra.mxu0 0.0
        %480 = vmatprep.subr.mxu0 0.0
        %481 = vmatpush1.msra.mxu0 0.0
        %482 = vmatprep.subr.mxu0 0.0
        %483 = vmatpush1.msra.mxu0 0.0
        %484 = vmatprep.subr.mxu0 0.0
        %485 = vmatpush1.msra.mxu0 0.0
        %486 = vmatprep.subr.mxu0 0.0
        %487 = vmatpush1.msra.mxu0 0.0
        %488 = vmatprep.subr.mxu0 0.0
        %489 = vmatpush1.msra.mxu0 0.0
        %490 = vmatprep.subr.mxu0 0.0
        %491 = vmatpush1.msra.mxu0 0.0
        %492 = vmatprep.mubr.f32.mxu0 0.0
        %v493 = vand.u32 %v262, 4294901760
        %v494 = vsub.f32 %v262, %v493
        %495 = vmatmul.mubr.f32.gmra.mrb[0].mxu0 %v494
        %v496 = vpop.f32.mrb[0].mxu0
        %v497 = vadd.f32 %v420, %v496
        %v498 = vpop.f32.mrb[0].mxu0
        %v499 = vadd.f32 %v422, %v498
        %500 = vdwg.mxu0
        %v501 = vand.u32 %v259, 4294901760
        %502 = vmatprep.subr.mxu0 %v501
        %v503 = vand.u32 %v258, 4294901760
        %504 = vmatpush1.msra.mxu0 %v503
        %505 = vmatprep.subr.mxu0 0.0
        %506 = vmatpush1.msra.mxu0 0.0
        %507 = vmatprep.subr.mxu0 0.0
        %508 = vmatpush1.msra.mxu0 0.0
        %509 = vmatprep.subr.mxu0 0.0
        %510 = vmatpush1.msra.mxu0 0.0
        %511 = vmatprep.subr.mxu0 0.0
        %512 = vmatpush1.msra.mxu0 0.0
        %513 = vmatprep.subr.mxu0 0.0
        %514 = vmatpush1.msra.mxu0 0.0
        %515 = vmatprep.subr.mxu0 0.0
        %516 = vmatpush1.msra.mxu0 0.0
        %517 = vmatprep.subr.mxu0 0.0
        %518 = vmatpush1.msra.mxu0 0.0
        %519 = vmatprep.subr.mxu0 0.0
        %520 = vmatpush1.msra.mxu0 0.0
        %521 = vmatprep.subr.mxu0 0.0
        %522 = vmatpush1.msra.mxu0 0.0
        %523 = vmatprep.subr.mxu0 0.0
        %524 = vmatpush1.msra.mxu0 0.0
        %525 = vmatprep.subr.mxu0 0.0
        %526 = vmatpush1.msra.mxu0 0.0
        %527 = vmatprep.subr.mxu0 0.0
        %528 = vmatpush1.msra.mxu0 0.0
        %529 = vmatprep.subr.mxu0 0.0
        %530 = vmatpush1.msra.mxu0 0.0
        %531 = vmatprep.subr.mxu0 0.0
        %532 = vmatpush1.msra.mxu0 0.0
        %533 = vmatprep.subr.mxu0 0.0
        %534 = vmatpush1.msra.mxu0 0.0
        %535 = vmatprep.subr.mxu0 0.0
        %536 = vmatpush1.msra.mxu0 0.0
        %537 = vmatprep.subr.mxu0 0.0
        %538 = vmatpush1.msra.mxu0 0.0
        %539 = vmatprep.subr.mxu0 0.0
        %540 = vmatpush1.msra.mxu0 0.0
        %541 = vmatprep.subr.mxu0 0.0
        %542 = vmatpush1.msra.mxu0 0.0
        %543 = vmatprep.subr.mxu0 0.0
        %544 = vmatpush1.msra.mxu0 0.0
        %545 = vmatprep.subr.mxu0 0.0
        %546 = vmatpush1.msra.mxu0 0.0
        %547 = vmatprep.subr.mxu0 0.0
        %548 = vmatpush1.msra.mxu0 0.0
        %549 = vmatprep.subr.mxu0 0.0
        %550 = vmatpush1.msra.mxu0 0.0
        %551 = vmatprep.subr.mxu0 0.0
        %552 = vmatpush1.msra.mxu0 0.0
        %553 = vmatprep.subr.mxu0 0.0
        %554 = vmatpush1.msra.mxu0 0.0
        %555 = vmatprep.subr.mxu0 0.0
        %556 = vmatpush1.msra.mxu0 0.0
        %557 = vmatprep.subr.mxu0 0.0
        %558 = vmatpush1.msra.mxu0 0.0
        %559 = vmatprep.subr.mxu0 0.0
        %560 = vmatpush1.msra.mxu0 0.0
        %561 = vmatprep.subr.mxu0 0.0
        %562 = vmatpush1.msra.mxu0 0.0
        %563 = vmatprep.subr.mxu0 0.0
        %564 = vmatpush1.msra.mxu0 0.0
        %565 = vmatprep.subr.mxu0 0.0
        %566 = vmatpush1.msra.mxu0 0.0
        %567 = vmatprep.mubr.f32.mxu0 0.0
        %v568 = vand.u32 %v262, 4294901760
        %v569 = vsub.f32 %v262, %v568
        %v570 = vand.u32 %v569, 4294901760
        %571 = vmatmul.mubr.f32.gmra.mrb[0].mxu0 %v570
        %v572 = vpop.f32.mrb[0].mxu0
        %v573 = vadd.f32 %v497, %v572
        %v574 = vpop.f32.mrb[0].mxu0
        %v575 = vadd.f32 %v499, %v574
        %576 = vdwg.mxu0
        %v577 = vand.u32 %v259, 4294901760
        %v578 = vsub.f32 %v259, %v577
        %v579 = vand.u32 %v578, 4294901760
        %580 = vmatprep.subr.mxu0 %v579
        %v581 = vand.u32 %v258, 4294901760
        %v582 = vsub.f32 %v258, %v581
        %v583 = vand.u32 %v582, 4294901760
        %584 = vmatpush1.msra.mxu0 %v583
        %585 = vmatprep.subr.mxu0 0.0
        %586 = vmatpush1.msra.mxu0 0.0
        %587 = vmatprep.subr.mxu0 0.0
        %588 = vmatpush1.msra.mxu0 0.0
        %589 = vmatprep.subr.mxu0 0.0
        %590 = vmatpush1.msra.mxu0 0.0
        %591 = vmatprep.subr.mxu0 0.0
        %592 = vmatpush1.msra.mxu0 0.0
        %593 = vmatprep.subr.mxu0 0.0
        %594 = vmatpush1.msra.mxu0 0.0
        %595 = vmatprep.subr.mxu0 0.0
        %596 = vmatpush1.msra.mxu0 0.0
        %597 = vmatprep.subr.mxu0 0.0
        %598 = vmatpush1.msra.mxu0 0.0
        %599 = vmatprep.subr.mxu0 0.0
        %600 = vmatpush1.msra.mxu0 0.0
        %601 = vmatprep.subr.mxu0 0.0
        %602 = vmatpush1.msra.mxu0 0.0
        %603 = vmatprep.subr.mxu0 0.0
        %604 = vmatpush1.msra.mxu0 0.0
        %605 = vmatprep.subr.mxu0 0.0
        %606 = vmatpush1.msra.mxu0 0.0
        %607 = vmatprep.subr.mxu0 0.0
        %608 = vmatpush1.msra.mxu0 0.0
        %609 = vmatprep.subr.mxu0 0.0
        %610 = vmatpush1.msra.mxu0 0.0
        %611 = vmatprep.subr.mxu0 0.0
        %612 = vmatpush1.msra.mxu0 0.0
        %613 = vmatprep.subr.mxu0 0.0
        %614 = vmatpush1.msra.mxu0 0.0
        %615 = vmatprep.subr.mxu0 0.0
        %616 = vmatpush1.msra.mxu0 0.0
        %617 = vmatprep.subr.mxu0 0.0
        %618 = vmatpush1.msra.mxu0 0.0
        %619 = vmatprep.subr.mxu0 0.0
        %620 = vmatpush1.msra.mxu0 0.0
        %621 = vmatprep.subr.mxu0 0.0
        %622 = vmatpush1.msra.mxu0 0.0
        %623 = vmatprep.subr.mxu0 0.0
        %624 = vmatpush1.msra.mxu0 0.0
        %625 = vmatprep.subr.mxu0 0.0
        %626 = vmatpush1.msra.mxu0 0.0
        %627 = vmatprep.subr.mxu0 0.0
        %628 = vmatpush1.msra.mxu0 0.0
        %629 = vmatprep.subr.mxu0 0.0
        %630 = vmatpush1.msra.mxu0 0.0
        %631 = vmatprep.subr.mxu0 0.0
        %632 = vmatpush1.msra.mxu0 0.0
        %633 = vmatprep.subr.mxu0 0.0
        %634 = vmatpush1.msra.mxu0 0.0
        %635 = vmatprep.subr.mxu0 0.0
        %636 = vmatpush1.msra.mxu0 0.0
        %637 = vmatprep.subr.mxu0 0.0
        %638 = vmatpush1.msra.mxu0 0.0
        %639 = vmatprep.subr.mxu0 0.0
        %640 = vmatpush1.msra.mxu0 0.0
        %641 = vmatprep.subr.mxu0 0.0
        %642 = vmatpush1.msra.mxu0 0.0
        %643 = vmatprep.subr.mxu0 0.0
        %644 = vmatpush1.msra.mxu0 0.0
        %645 = vmatprep.subr.mxu0 0.0
        %646 = vmatpush1.msra.mxu0 0.0
        %647 = vmatprep.mubr.f32.mxu0 0.0
        %v648 = vand.u32 %v262, 4294901760
        %649 = vmatmul.mubr.f32.gmra.mrb[0].mxu0 %v648
        %v650 = vpop.f32.mrb[0].mxu0
        %v651 = vadd.f32 %v573, %v650
        %v652 = vpop.f32.mrb[0].mxu0
        %v653 = vadd.f32 %v575, %v652
        %654 = vdwg.mxu0
        %v655 = vand.u32 %v259, 4294901760
        %656 = vmatprep.subr.mxu0 %v655
        %v657 = vand.u32 %v258, 4294901760
        %658 = vmatpush1.msra.mxu0 %v657
        %659 = vmatprep.subr.mxu0 0.0
        %660 = vmatpush1.msra.mxu0 0.0
        %661 = vmatprep.subr.mxu0 0.0
        %662 = vmatpush1.msra.mxu0 0.0
        %663 = vmatprep.subr.mxu0 0.0
        %664 = vmatpush1.msra.mxu0 0.0
        %665 = vmatprep.subr.mxu0 0.0
        %666 = vmatpush1.msra.mxu0 0.0
        %667 = vmatprep.subr.mxu0 0.0
        %668 = vmatpush1.msra.mxu0 0.0
        %669 = vmatprep.subr.mxu0 0.0
        %670 = vmatpush1.msra.mxu0 0.0
        %671 = vmatprep.subr.mxu0 0.0
        %672 = vmatpush1.msra.mxu0 0.0
        %673 = vmatprep.subr.mxu0 0.0
        %674 = vmatpush1.msra.mxu0 0.0
        %675 = vmatprep.subr.mxu0 0.0
        %676 = vmatpush1.msra.mxu0 0.0
        %677 = vmatprep.subr.mxu0 0.0
        %678 = vmatpush1.msra.mxu0 0.0
        %679 = vmatprep.subr.mxu0 0.0
        %680 = vmatpush1.msra.mxu0 0.0
        %681 = vmatprep.subr.mxu0 0.0
        %682 = vmatpush1.msra.mxu0 0.0
        %683 = vmatprep.subr.mxu0 0.0
        %684 = vmatpush1.msra.mxu0 0.0
        %685 = vmatprep.subr.mxu0 0.0
        %686 = vmatpush1.msra.mxu0 0.0
        %687 = vmatprep.subr.mxu0 0.0
        %688 = vmatpush1.msra.mxu0 0.0
        %689 = vmatprep.subr.mxu0 0.0
        %690 = vmatpush1.msra.mxu0 0.0
        %691 = vmatprep.subr.mxu0 0.0
        %692 = vmatpush1.msra.mxu0 0.0
        %693 = vmatprep.subr.mxu0 0.0
        %694 = vmatpush1.msra.mxu0 0.0
        %695 = vmatprep.subr.mxu0 0.0
        %696 = vmatpush1.msra.mxu0 0.0
        %697 = vmatprep.subr.mxu0 0.0
        %698 = vmatpush1.msra.mxu0 0.0
        %699 = vmatprep.subr.mxu0 0.0
        %700 = vmatpush1.msra.mxu0 0.0
        %701 = vmatprep.subr.mxu0 0.0
        %702 = vmatpush1.msra.mxu0 0.0
        %703 = vmatprep.subr.mxu0 0.0
        %704 = vmatpush1.msra.mxu0 0.0
        %705 = vmatprep.subr.mxu0 0.0
        %706 = vmatpush1.msra.mxu0 0.0
        %707 = vmatprep.subr.mxu0 0.0
        %708 = vmatpush1.msra.mxu0 0.0
        %709 = vmatprep.subr.mxu0 0.0
        %710 = vmatpush1.msra.mxu0 0.0
        %711 = vmatprep.subr.mxu0 0.0
        %712 = vmatpush1.msra.mxu0 0.0
        %713 = vmatprep.subr.mxu0 0.0
        %714 = vmatpush1.msra.mxu0 0.0
        %715 = vmatprep.subr.mxu0 0.0
        %716 = vmatpush1.msra.mxu0 0.0
        %717 = vmatprep.subr.mxu0 0.0
        %718 = vmatpush1.msra.mxu0 0.0
        %719 = vmatprep.subr.mxu0 0.0
        %720 = vmatpush1.msra.mxu0 0.0
        %721 = vmatprep.mubr.f32.mxu0 0.0
        %v722 = vand.u32 %v262, 4294901760
        %723 = vmatmul.mubr.f32.gmra.mrb[0].mxu0 %v722
        %v724 = vpop.f32.mrb[0].mxu0
        %v725 = vadd.f32 %v651, %v724
        %v726 = vpop.f32.mrb[0].mxu0
        %v727 = vadd.f32 %v653, %v726
        %728 = vdwg.mxu0
        %v729 = vld [vmem:[%s249] sm:$0x3]
        %v730 = vld [vmem:[%s254] sm:$0x3]
        %v732 = vlaneseq
        %v733 = vshrl.u32 %v732, 7
        %v734 = vsub.s32 0, %v733
        %v735 = vrot.slane %v729, %v734
        %v736 = vlaneseq
        %v737 = vshrl.u32 %v736, 7
        %v738 = vsub.s32 1, %v737
        %v739 = vrot.slane %v729, %v738
        %v742 = vmul.f32 %v725, %v735
        %v743 = vmul.f32 %v727, %v739
        %v745 = vlaneseq
        %v746 = vshrl.u32 %v745, 7
        %v747 = vsub.s32 0, %v746
        %v748 = vrot.slane %v730, %v747
        %v749 = vlaneseq
        %v750 = vshrl.u32 %v749, 7
        %v751 = vsub.s32 1, %v750
        %v752 = vrot.slane %v730, %v751
        %v755 = vadd.f32 %v742, %v748
        %v756 = vadd.f32 %v743, %v752
        %757 = vst [vmem:[%s238] sm:$0xff] %v755
        %758 = vst [vmem:[%s238 + $0x8] sm:$0xff] %v756
        %s759 = sand.u32 %s141, 1
        %s760 = scalar_lea.sflag [#allocation3], %s759
        %s761 = sand.u32 %s141, 1
        %s762 = smul.addr %s761, 16
        %s763 = scalar_lea.vmem [#allocation2], %s762
        // Predicated region
        $region37: #{tpu_custom_call.1} parent=35 // pred_check
          %p764 = pneg %p151
        $region38: #{tpu_custom_call.1} parent=35 // pred_check_branch
          %766 = sbr.rel (%p764) target = $region40
        $region39: #{tpu_custom_call.1} parent=35 // pred_region
          %s767 = smul.u32 2, %s23
          %s769 = ssub.s32 256, 256
          %770 = vsyncadd %s760, %s769
          %s771 = smul.addr %s22, 2
          %s772 = sadd.s32 %s767, %s771
          %s773 = smul.addr %s772, 128
          %s774 = scalar_lea.hbm %s4, %s773
          %s776 = sshll.u32 %s763, 4
          %s777 = int_to_ptr.vmem [resolvable:$true] %s776
          %779 = dma.vmem_to_hbm [thread:$0]  %s777, 256, %s774, %s760
        $region40: #{tpu_custom_call.1} parent=35 // pred_fallthru
          _
      $region36: #{tpu_custom_call.1} parent=5 // pred_fallthru
        _
      %p780 = scmp.le.s32.totalorder 2, %s13
      // Predicated region
      $region41: #{tpu_custom_call.1} parent=5 // pred_check
        %p781 = pneg %p780
      $region42: #{tpu_custom_call.1} parent=5 // pred_check_branch
        %783 = sbr.rel (%p781) target = $region44
      $region43: #{tpu_custom_call.1} parent=5 // pred_region
        %s784 = ssub.s32 %s13, 2
        // Predicated region
        $region45: #{tpu_custom_call.1} parent=43 // pred_check
          %p785 = pneg %p157
        $region46: #{tpu_custom_call.1} parent=43 // pred_check_branch
          %787 = sbr.rel (%p785) target = $region48
        $region47: #{tpu_custom_call.1} parent=43 // pred_region
          %s788 = sand.u32 %s142, 1
          %s789 = scalar_lea.sflag [#allocation3], %s788
          %s790 = sand.u32 %s142, 1
          %s791 = smul.addr %s790, 16
          %s792 = scalar_lea.vmem [#allocation2], %s791
          %793 = dma.done %s789, 256
        $region48: #{tpu_custom_call.1} parent=43 // pred_fallthru
          _
      $region44: #{tpu_custom_call.1} parent=5 // pred_fallthru
        _
    $region6: #{tpu_custom_call.1} parent=1 // loop_footer
      %s17 = sadd.s32 1, %s13
    $region7: #{tpu_custom_call.1} parent=1 // loop_footer_branch
      %12 = sbr.rel target = $region3
    $region8: #{tpu_custom_call.1} parent=1 // loop_exit
      _
    %794 = vsyncpa [#allocation3], 1
    %s795 = scalar_lea.sflag [#allocation3], 1
    %796 = vsyncpa %s795, 1

// kernel: tpu_custom_call.1
$region0: #{tpu_custom_call.1}
  #allocation0 [shape = 'u32[]', space=smem, size = 0x4, offset = 0x4, fixed_abs, tag = 'smem constant byte address 0x4 - core index']
  #allocation1 [shape = 'u32[144,128]{1,0:T(1,128)}', space=vmem, size = 0x12000, scoped, tag = 'internal scratch']
  %s0 = inlined_call_operand.vmem [shape: f32[32,8], index: 0, kind: input, shape index: {}]
  %s1 = inlined_call_operand.vmem [shape: f32[8,256], index: 1, kind: input, shape index: {}]
  %s2 = inlined_call_operand.vmem [shape: f32[1,256], index: 2, kind: input, shape index: {}]
  %s3 = inlined_call_operand.vmem [shape: f32[1,256], index: 3, kind: input, shape index: {}]
  %s4 = inlined_call_operand.hbm [shape: f32[32,256], index: 4, kind: output, shape index: {}]
  %s5 = sld [smem:[#allocation0]]
  $region49: #{tpu_custom_call.1} parent=0
    _
  %s7 = ssub.s32 1, %s5
  %s8 = scalar_select 0, %s7, %s5
  $region1: #{tpu_custom_call.1} parent=0
    #allocation2 [shape = 'u8[16384]{0}', space=vmem, size = 0x4000, scoped, tag = 'output window, operand 0']
    #allocation3 [shape = 's32[2]{0}', space=sflag, size = 0x8, scoped, tag = 'scoped memory for tpu_custom_call.1']
    %9 = vsyncpa [#allocation3], 0
    %s10 = scalar_lea.sflag [#allocation3], 1
    %11 = vsyncpa %s10, 0
    loop: start=0, step=1, limit=6
    $region2: #{tpu_custom_call.1} parent=1 // loop_pre_header
      _
    $region3: #{tpu_custom_call.1} parent=1 // loop_header
      %s13 = sphi 0, %s17
      %p14 = scmp.ge.s32.totalorder %s13, 6
      %s20 = sphi 0, %s32
      %s21 = sphi 0, %s28
      %s22 = sphi 0, %s20
      %s23 = sphi 0, %s21
      %s24 = sphi 0, %s22
      %s25 = sphi 0, %s23
      %s37 = sphi 0, %s39
      %s40 = sphi 0, %s37
      %s41 = sphi 0, %s40
      %s57 = sphi 0, %s41
      %s61 = sphi 0, %s61
      %s63 = sphi 0, %s61
      %s64 = sphi 0, %s63
      %s78 = sphi 0, %s64
      %s84 = sphi 0, %s86
      %s87 = sphi 0, %s84
      %s88 = sphi 0, %s87
      %s104 = sphi 0, %s88
      %s110 = sphi 0, %s112
      %s113 = sphi 0, %s110
      %s114 = sphi 0, %s113
      %s130 = sphi 0, %s114
      %s138 = sphi 0, %s140
      %s141 = sphi 0, %s138
      %s142 = sphi 0, %s141
      %s158 = sphi 0, %s142
    $region4: #{tpu_custom_call.1} parent=1 // loop_header_branch
      %16 = sbr.rel (%p14) target = $region8
    $region5: #{tpu_custom_call.1} parent=1 // loop_body
      %s18 = ssub.s32 %s13, 1
      %s19 = ssub.s32 %s13, 2
      %s26 = sadd.s32 1, %s21
      %p27 = scmp.ge.s32.totalorder %s26, 1
      %s28 = scalar_select %p27, 0, %s26
      %s29 = sadd.s32 1, %s20
      %s30 = scalar_select %p27, %s29, %s20
      %p31 = scmp.ge.s32.totalorder %s30, 4
      %s32 = scalar_select %p31, 0, %s30
      %s33 = ssub.s32 %s20, %s32
      %s34 = ssub.s32 %s21, %s28
      %s35 = sor.u32 %s33, %s34
      %p36 = scmp.eq.s32.totalorder %s35, 0
      %s38 = sadd.s32 %s37, 1
      %s39 = scalar_select %p36, %s37, %s38
      %p42 = pneg %p36
      %p43 = scmp.eq.s32.totalorder %s13, 3
      %p44 = por %p42, %p43
      %p45 = scmp.ne.s32.totalorder %s37, %s40
      %p46 = scmp.eq.s32.totalorder %s13, 0
      %p47 = por %p45, %p46
      %p48 = scmp.ne.s32.totalorder %s37, %s40
      %p49 = scmp.eq.s32.totalorder %s18, 3
      %p50 = por %p48, %p49
      %p51 = scmp.ne.s32.totalorder %s40, %s41
      %p52 = scmp.eq.s32.totalorder %s18, 0
      %p53 = por %p51, %p52
      %p54 = scmp.ne.s32.totalorder %s40, %s41
      %p55 = scmp.eq.s32.totalorder %s19, 3
      %p56 = por %p54, %p55
      %p58 = scmp.ne.s32.totalorder %s41, %s57
      %p59 = scmp.eq.s32.totalorder %s19, 0
      %p60 = por %p58, %p59
      %s62 = sadd.s32 %s61, 1
      %p65 = scmp.eq.s32.totalorder %s13, 3
      %p66 = scmp.ne.s32.totalorder %s61, %s63
      %p67 = scmp.eq.s32.totalorder %s13, 0
      %p68 = por %p66, %p67
      %p69 = scmp.ne.s32.totalorder %s61, %s63
      %p70 = scmp.eq.s32.totalorder %s18, 3
      %p71 = por %p69, %p70
      %p72 = scmp.ne.s32.totalorder %s63, %s64
      %p73 = scmp.eq.s32.totalorder %s18, 0
      %p74 = por %p72, %p73
      %p75 = scmp.ne.s32.totalorder %s63, %s64
      %p76 = scmp.eq.s32.totalorder %s19, 3
      %p77 = por %p75, %p76
      %p79 = scmp.ne.s32.totalorder %s64, %s78
      %p80 = scmp.eq.s32.totalorder %s19, 0
      %p81 = por %p79, %p80
      %s82 = ssub.s32 %s21, %s28
      %p83 = scmp.eq.s32.totalorder %s82, 0
      %s85 = sadd.s32 %s84, 1
      %s86 = scalar_select %p83, %s84, %s85
      %p89 = pneg %p83
      %p90 = scmp.eq.s32.totalorder %s13, 3
      %p91 = por %p89, %p90
      %p92 = scmp.ne.s32.totalorder %s84, %s87
      %p93 = scmp.eq.s32.totalorder %s13, 0
      %p94 = por %p92, %p93
      %p95 = scmp.ne.s32.totalorder %s84, %s87
      %p96 = scmp.eq.s32.totalorder %s18, 3
      %p97 = por %p95, %p96
      %p98 = scmp.ne.s32.totalorder %s87, %s88
      %p99 = scmp.eq.s32.totalorder %s18, 0
      %p100 = por %p98, %p99
      %p101 = scmp.ne.s32.totalorder %s87, %s88
      %p102 = scmp.eq.s32.totalorder %s19, 3
      %p103 = por %p101, %p102
      %p105 = scmp.ne.s32.totalorder %s88, %s104
      %p106 = scmp.eq.s32.totalorder %s19, 0
      %p107 = por %p105, %p106
      %s108 = ssub.s32 %s21, %s28
      %p109 = scmp.eq.s32.totalorder %s108, 0
      %s111 = sadd.s32 %s110, 1
      %s112 = scalar_select %p109, %s110, %s111
      %p115 = pneg %p109
      %p116 = scmp.eq.s32.totalorder %s13, 3
      %p117 = por %p115, %p116
      %p118 = scmp.ne.s32.totalorder %s110, %s113
      %p119 = scmp.eq.s32.totalorder %s13, 0
      %p120 = por %p118, %p119
      %p121 = scmp.ne.s32.totalorder %s110, %s113
      %p122 = scmp.eq.s32.totalorder %s18, 3
      %p123 = por %p121, %p122
      %p124 = scmp.ne.s32.totalorder %s113, %s114
      %p125 = scmp.eq.s32.totalorder %s18, 0
      %p126 = por %p124, %p125
      %p127 = scmp.ne.s32.totalorder %s113, %s114
      %p128 = scmp.eq.s32.totalorder %s19, 3
      %p129 = por %p127, %p128
      %p131 = scmp.ne.s32.totalorder %s114, %s130
      %p132 = scmp.eq.s32.totalorder %s19, 0
      %p133 = por %p131, %p132
      %s134 = ssub.s32 %s20, %s32
      %s135 = ssub.s32 %s21, %s28
      %s136 = sor.u32 %s134, %s135
      %p137 = scmp.eq.s32.totalorder %s136, 0
      %s139 = sadd.s32 %s138, 1
      %s140 = scalar_select %p137, %s138, %s139
      %p143 = pneg %p137
      %p144 = scmp.eq.s32.totalorder %s13, 3
      %p145 = por %p143, %p144
      %p146 = scmp.ne.s32.totalorder %s138, %s141
      %p147 = scmp.eq.s32.totalorder %s13, 0
      %p148 = por %p146, %p147
      %p149 = scmp.ne.s32.totalorder %s138, %s141
      %p150 = scmp.eq.s32.totalorder %s18, 3
      %p151 = por %p149, %p150
      %p152 = scmp.ne.s32.totalorder %s141, %s142
      %p153 = scmp.eq.s32.totalorder %s18, 0
      %p154 = por %p152, %p153
      %p155 = scmp.ne.s32.totalorder %s141, %s142
      %p156 = scmp.eq.s32.totalorder %s19, 3
      %p157 = por %p155, %p156
      %p159 = scmp.ne.s32.totalorder %s142, %s158
      %p160 = scmp.eq.s32.totalorder %s19, 0
      %p161 = por %p159, %p160
      %p162 = scmp.le.s32.totalorder 1, %s13
      %p163 = scmp.lt.s32.totalorder %s13, 5
      %p164 = pnand %p162, %p163
      %p165 = pneg %p164
      // Predicated region
      $region9: #{tpu_custom_call.1} parent=5 // pred_check
        _
      $region10: #{tpu_custom_call.1} parent=5 // pred_check_branch
        %167 = sbr.rel (%p164) target = $region12
      $region11: #{tpu_custom_call.1} parent=5 // pred_region
        %s168 = ssub.s32 %s13, 1
        // Predicated region
        $region13: #{tpu_custom_call.1} parent=11 // pred_check
          %p169 = pneg %p74
        $region14: #{tpu_custom_call.1} parent=11 // pred_check_branch
          %171 = sbr.rel (%p169) target = $region16
        $region15: #{tpu_custom_call.1} parent=11 // pred_region
          _
        $region16: #{tpu_custom_call.1} parent=11 // pred_fallthru
          _
        // Predicated region
        $region17: #{tpu_custom_call.1} parent=11 // pred_check
          %p172 = pneg %p100
        $region18: #{tpu_custom_call.1} parent=11 // pred_check_branch
          %174 = sbr.rel (%p172) target = $region20
        $region19: #{tpu_custom_call.1} parent=11 // pred_region
          %s175 = smul.u32 2, %s23
          %p176 = scmp.lt.s32.totalorder %s175, 1
          %s177 = scalar_select %p176, %s175, 1
          %s178 = scalar_lea.vmem %s2, %s177
          %s179 = smul.u32 2, %s23
        $region20: #{tpu_custom_call.1} parent=11 // pred_fallthru
          _
        // Predicated region
        $region21: #{tpu_custom_call.1} parent=11 // pred_check
          %p180 = pneg %p126
        $region22: #{tpu_custom_call.1} parent=11 // pred_check_branch
          %182 = sbr.rel (%p180) target = $region24
        $region23: #{tpu_custom_call.1} parent=11 // pred_region
          %s183 = smul.u32 2, %s23
          %p184 = scmp.lt.s32.totalorder %s183, 1
          %s185 = scalar_select %p184, %s183, 1
          %s186 = scalar_lea.vmem %s3, %s185
          %s187 = smul.u32 2, %s23
        $region24: #{tpu_custom_call.1} parent=11 // pred_fallthru
          _
      $region12: #{tpu_custom_call.1} parent=5 // pred_fallthru
        _
      %p188 = scmp.lt.s32.totalorder %s13, 4
      // Predicated region
      $region25: #{tpu_custom_call.1} parent=5 // pred_check
        %p189 = pneg %p188
      $region26: #{tpu_custom_call.1} parent=5 // pred_check_branch
        %191 = sbr.rel (%p189) target = $region28
      $region27: #{tpu_custom_call.1} parent=5 // pred_region
        // Predicated region
        $region29: #{tpu_custom_call.1} parent=27 // pred_check
          %p192 = pneg %p47
        $region30: #{tpu_custom_call.1} parent=27 // pred_check_branch
          %194 = sbr.rel (%p192) target = $region32
        $region31: #{tpu_custom_call.1} parent=27 // pred_region
          %p195 = scmp.lt.s32.totalorder %s20, 3
          %s196 = scalar_select %p195, %s20, 3
          %p197 = scmp.lt.s32.totalorder %s21, 0
          %s198 = scalar_select %p197, %s21, 0
          %s199 = sadd.s32 %s198, %s196
          %s200 = smul.addr %s199, 8
          %s201 = scalar_lea.vmem %s0, %s200
        $region32: #{tpu_custom_call.1} parent=27 // pred_fallthru
          _
      $region28: #{tpu_custom_call.1} parent=5 // pred_fallthru
        _
      %p202 = scmp.le.s32.totalorder 1, %s13
      %p203 = scmp.lt.s32.totalorder %s13, 5
      %p204 = pnand %p202, %p203
      %p205 = pneg %p204
      // Predicated region
      $region33: #{tpu_custom_call.1} parent=5 // pred_check
        _
      $region34: #{tpu_custom_call.1} parent=5 // pred_check_branch
        %207 = sbr.rel (%p204) target = $region36
      $region35: #{tpu_custom_call.1} parent=5 // pred_region
        %s208 = ssub.s32 %s13, 1
        %p209 = scmp.lt.s32.totalorder %s22, 3
        %s210 = scalar_select %p209, %s22, 3
        %p211 = scmp.lt.s32.totalorder %s23, 0
        %s212 = scalar_select %p211, %s23, 0
        %s213 = sadd.s32 %s212, %s210
        %s214 = smul.addr %s213, 8
        %s215 = scalar_lea.vmem %s0, %s214
        %p216 = pneg %p53
        %p217 = pneg %p50
        %p218 = pneg %p74
        %p219 = pneg %p71
        %s220 = smul.u32 2, %s23
        %p221 = scmp.lt.s32.totalorder %s220, 1
        %s222 = scalar_select %p221, %s220, 1
        %s223 = scalar_lea.vmem %s2, %s222
        %p224 = pneg %p100
        %p225 = pneg %p97
        %s226 = smul.u32 2, %s23
        %p227 = scmp.lt.s32.totalorder %s226, 1
        %s228 = scalar_select %p227, %s226, 1
        %s229 = scalar_lea.vmem %s3, %s228
        %p230 = pneg %p126
        %p231 = pneg %p123
        %p232 = pneg %p154
        %p233 = pneg %p151
        %s234 = sand.u32 %s141, 1
        %s235 = scalar_lea.sflag [#allocation3], %s234
        %s236 = sand.u32 %s141, 1
        %s237 = smul.addr %s236, 16
        %s238 = scalar_lea.vmem [#allocation2], %s237
        %p239 = scmp.lt.s32.totalorder %s22, 3
        %s240 = scalar_select %p239, %s22, 3
        %p241 = scmp.lt.s32.totalorder %s23, 0
        %s242 = scalar_select %p241, %s23, 0
        %s243 = sadd.s32 %s242, %s240
        %s244 = smul.addr %s243, 8
        %s245 = scalar_lea.vmem %s0, %s244
        %s246 = smul.u32 2, %s23
        %p247 = scmp.lt.s32.totalorder %s246, 1
        %s248 = scalar_select %p247, %s246, 1
        %s249 = scalar_lea.vmem %s2, %s248
        %s250 = smul.u32 2, %s23
        %s251 = smul.u32 2, %s23
        %p252 = scmp.lt.s32.totalorder %s251, 1
        %s253 = scalar_select %p252, %s251, 1
        %s254 = scalar_lea.vmem %s3, %s253
        %s255 = smul.u32 2, %s23
        %s256 = smul.u32 2, %s23
        %v257 = vld [vmem:[%s245] sm:$0xff]
        %v258 = vld [vmem:[%s1] sm:$0xff]
        %v259 = vld [vmem:[%s1 + $0x8] sm:$0xff]
        %vm260 = vcmask 64512
        %v262 = vsel %vm260, %v257, 0
        %v264 = vand.u32 %v259, 4294901760
        %265 = vmatprep.subr.mxu0 %v264
        %v266 = vand.u32 %v258, 4294901760
        %267 = vmatpush1.msra.mxu0 %v266
        %268 = vmatprep.subr.mxu0 0.0
        %269 = vmatpush1.msra.mxu0 0.0
        %270 = vmatprep.subr.mxu0 0.0
        %271 = vmatpush1.msra.mxu0 0.0
        %272 = vmatprep.subr.mxu0 0.0
        %273 = vmatpush1.msra.mxu0 0.0
        %274 = vmatprep.subr.mxu0 0.0
        %275 = vmatpush1.msra.mxu0 0.0
        %276 = vmatprep.subr.mxu0 0.0
        %277 = vmatpush1.msra.mxu0 0.0
        %278 = vmatprep.subr.mxu0 0.0
        %279 = vmatpush1.msra.mxu0 0.0
        %280 = vmatprep.subr.mxu0 0.0
        %281 = vmatpush1.msra.mxu0 0.0
        %282 = vmatprep.subr.mxu0 0.0
        %283 = vmatpush1.msra.mxu0 0.0
        %284 = vmatprep.subr.mxu0 0.0
        %285 = vmatpush1.msra.mxu0 0.0
        %286 = vmatprep.subr.mxu0 0.0
        %287 = vmatpush1.msra.mxu0 0.0
        %288 = vmatprep.subr.mxu0 0.0
        %289 = vmatpush1.msra.mxu0 0.0
        %290 = vmatprep.subr.mxu0 0.0
        %291 = vmatpush1.msra.mxu0 0.0
        %292 = vmatprep.subr.mxu0 0.0
        %293 = vmatpush1.msra.mxu0 0.0
        %294 = vmatprep.subr.mxu0 0.0
        %295 = vmatpush1.msra.mxu0 0.0
        %296 = vmatprep.subr.mxu0 0.0
        %297 = vmatpush1.msra.mxu0 0.0
        %298 = vmatprep.subr.mxu0 0.0
        %299 = vmatpush1.msra.mxu0 0.0
        %300 = vmatprep.subr.mxu0 0.0
        %301 = vmatpush1.msra.mxu0 0.0
        %302 = vmatprep.subr.mxu0 0.0
        %303 = vmatpush1.msra.mxu0 0.0
        %304 = vmatprep.subr.mxu0 0.0
        %305 = vmatpush1.msra.mxu0 0.0
        %306 = vmatprep.subr.mxu0 0.0
        %307 = vmatpush1.msra.mxu0 0.0
        %308 = vmatprep.subr.mxu0 0.0
        %309 = vmatpush1.msra.mxu0 0.0
        %310 = vmatprep.subr.mxu0 0.0
        %311 = vmatpush1.msra.mxu0 0.0
        %312 = vmatprep.subr.mxu0 0.0
        %313 = vmatpush1.msra.mxu0 0.0
        %314 = vmatprep.subr.mxu0 0.0
        %315 = vmatpush1.msra.mxu0 0.0
        %316 = vmatprep.subr.mxu0 0.0
        %317 = vmatpush1.msra.mxu0 0.0
        %318 = vmatprep.subr.mxu0 0.0
        %319 = vmatpush1.msra.mxu0 0.0
        %320 = vmatprep.subr.mxu0 0.0
        %321 = vmatpush1.msra.mxu0 0.0
        %322 = vmatprep.subr.mxu0 0.0
        %323 = vmatpush1.msra.mxu0 0.0
        %324 = vmatprep.subr.mxu0 0.0
        %325 = vmatpush1.msra.mxu0 0.0
        %326 = vmatprep.subr.mxu0 0.0
        %327 = vmatpush1.msra.mxu0 0.0
        %328 = vmatprep.subr.mxu0 0.0
        %329 = vmatpush1.msra.mxu0 0.0
        %330 = vmatprep.mubr.f32.mxu0 0.0
        %v331 = vand.u32 %v262, 4294901760
        %v332 = vsub.f32 %v262, %v331
        %v333 = vand.u32 %v332, 4294901760
        %v334 = vsub.f32 %v332, %v333
        %v335 = vand.u32 %v334, 4294901760
        %336 = vmatmul.mubr.f32.gmra.mrb[0].mxu0 %v335
        %v337 = vpop.f32.mrb[0].mxu0
        %v338 = vadd.f32 0.0, %v337
        %v339 = vpop.f32.mrb[0].mxu0
        %v340 = vadd.f32 0.0, %v339
        %341 = vdwg.mxu0
        %v342 = vand.u32 %v259, 4294901760
        %v343 = vsub.f32 %v259, %v342
        %v344 = vand.u32 %v343, 4294901760
        %v345 = vsub.f32 %v343, %v344
        %v346 = vand.u32 %v345, 4294901760
        %347 = vmatprep.subr.mxu0 %v346
        %v348 = vand.u32 %v258, 4294901760
        %v349 = vsub.f32 %v258, %v348
        %v350 = vand.u32 %v349, 4294901760
        %v351 = vsub.f32 %v349, %v350
        %v352 = vand.u32 %v351, 4294901760
        %353 = vmatpush1.msra.mxu0 %v352
        %354 = vmatprep.subr.mxu0 0.0
        %355 = vmatpush1.msra.mxu0 0.0
        %356 = vmatprep.subr.mxu0 0.0
        %357 = vmatpush1.msra.mxu0 0.0
        %358 = vmatprep.subr.mxu0 0.0
        %359 = vmatpush1.msra.mxu0 0.0
        %360 = vmatprep.subr.mxu0 0.0
        %361 = vmatpush1.msra.mxu0 0.0
        %362 = vmatprep.subr.mxu0 0.0
        %363 = vmatpush1.msra.mxu0 0.0
        %364 = vmatprep.subr.mxu0 0.0
        %365 = vmatpush1.msra.mxu0 0.0
        %366 = vmatprep.subr.mxu0 0.0
        %367 = vmatpush1.msra.mxu0 0.0
        %368 = vmatprep.subr.mxu0 0.0
        %369 = vmatpush1.msra.mxu0 0.0
        %370 = vmatprep.subr.mxu0 0.0
        %371 = vmatpush1.msra.mxu0 0.0
        %372 = vmatprep.subr.mxu0 0.0
        %373 = vmatpush1.msra.mxu0 0.0
        %374 = vmatprep.subr.mxu0 0.0
        %375 = vmatpush1.msra.mxu0 0.0
        %376 = vmatprep.subr.mxu0 0.0
        %377 = vmatpush1.msra.mxu0 0.0
        %378 = vmatprep.subr.mxu0 0.0
        %379 = vmatpush1.msra.mxu0 0.0
        %380 = vmatprep.subr.mxu0 0.0
        %381 = vmatpush1.msra.mxu0 0.0
        %382 = vmatprep.subr.mxu0 0.0
        %383 = vmatpush1.msra.mxu0 0.0
        %384 = vmatprep.subr.mxu0 0.0
        %385 = vmatpush1.msra.mxu0 0.0
        %386 = vmatprep.subr.mxu0 0.0
        %387 = vmatpush1.msra.mxu0 0.0
        %388 = vmatprep.subr.mxu0 0.0
        %389 = vmatpush1.msra.mxu0 0.0
        %390 = vmatprep.subr.mxu0 0.0
        %391 = vmatpush1.msra.mxu0 0.0
        %392 = vmatprep.subr.mxu0 0.0
        %393 = vmatpush1.msra.mxu0 0.0
        %394 = vmatprep.subr.mxu0 0.0
        %395 = vmatpush1.msra.mxu0 0.0
        %396 = vmatprep.subr.mxu0 0.0
        %397 = vmatpush1.msra.mxu0 0.0
        %398 = vmatprep.subr.mxu0 0.0
        %399 = vmatpush1.msra.mxu0 0.0
        %400 = vmatprep.subr.mxu0 0.0
        %401 = vmatpush1.msra.mxu0 0.0
        %402 = vmatprep.subr.mxu0 0.0
        %403 = vmatpush1.msra.mxu0 0.0
        %404 = vmatprep.subr.mxu0 0.0
        %405 = vmatpush1.msra.mxu0 0.0
        %406 = vmatprep.subr.mxu0 0.0
        %407 = vmatpush1.msra.mxu0 0.0
        %408 = vmatprep.subr.mxu0 0.0
        %409 = vmatpush1.msra.mxu0 0.0
        %410 = vmatprep.subr.mxu0 0.0
        %411 = vmatpush1.msra.mxu0 0.0
        %412 = vmatprep.subr.mxu0 0.0
        %413 = vmatpush1.msra.mxu0 0.0
        %414 = vmatprep.subr.mxu0 0.0
        %415 = vmatpush1.msra.mxu0 0.0
        %416 = vmatprep.mubr.f32.mxu0 0.0
        %v417 = vand.u32 %v262, 4294901760
        %418 = vmatmul.mubr.f32.gmra.mrb[0].mxu0 %v417
        %v419 = vpop.f32.mrb[0].mxu0
        %v420 = vadd.f32 %v338, %v419
        %v421 = vpop.f32.mrb[0].mxu0
        %v422 = vadd.f32 %v340, %v421
        %423 = vdwg.mxu0
        %v424 = vand.u32 %v259, 4294901760
        %v425 = vsub.f32 %v259, %v424
        %426 = vmatprep.subr.mxu0 %v425
        %v427 = vand.u32 %v258, 4294901760
        %v428 = vsub.f32 %v258, %v427
        %429 = vmatpush1.msra.mxu0 %v428
        %430 = vmatprep.subr.mxu0 0.0
        %431 = vmatpush1.msra.mxu0 0.0
        %432 = vmatprep.subr.mxu0 0.0
        %433 = vmatpush1.msra.mxu0 0.0
        %434 = vmatprep.subr.mxu0 0.0
        %435 = vmatpush1.msra.mxu0 0.0
        %436 = vmatprep.subr.mxu0 0.0
        %437 = vmatpush1.msra.mxu0 0.0
        %438 = vmatprep.subr.mxu0 0.0
        %439 = vmatpush1.msra.mxu0 0.0
        %440 = vmatprep.subr.mxu0 0.0
        %441 = vmatpush1.msra.mxu0 0.0
        %442 = vmatprep.subr.mxu0 0.0
        %443 = vmatpush1.msra.mxu0 0.0
        %444 = vmatprep.subr.mxu0 0.0
        %445 = vmatpush1.msra.mxu0 0.0
        %446 = vmatprep.subr.mxu0 0.0
        %447 = vmatpush1.msra.mxu0 0.0
        %448 = vmatprep.subr.mxu0 0.0
        %449 = vmatpush1.msra.mxu0 0.0
        %450 = vmatprep.subr.mxu0 0.0
        %451 = vmatpush1.msra.mxu0 0.0
        %452 = vmatprep.subr.mxu0 0.0
        %453 = vmatpush1.msra.mxu0 0.0
        %454 = vmatprep.subr.mxu0 0.0
        %455 = vmatpush1.msra.mxu0 0.0
        %456 = vmatprep.subr.mxu0 0.0
        %457 = vmatpush1.msra.mxu0 0.0
        %458 = vmatprep.subr.mxu0 0.0
        %459 = vmatpush1.msra.mxu0 0.0
        %460 = vmatprep.subr.mxu0 0.0
        %461 = vmatpush1.msra.mxu0 0.0
        %462 = vmatprep.subr.mxu0 0.0
        %463 = vmatpush1.msra.mxu0 0.0
        %464 = vmatprep.subr.mxu0 0.0
        %465 = vmatpush1.msra.mxu0 0.0
        %466 = vmatprep.subr.mxu0 0.0
        %467 = vmatpush1.msra.mxu0 0.0
        %468 = vmatprep.subr.mxu0 0.0
        %469 = vmatpush1.msra.mxu0 0.0
        %470 = vmatprep.subr.mxu0 0.0
        %471 = vmatpush1.msra.mxu0 0.0
        %472 = vmatprep.subr.mxu0 0.0
        %473 = vmatpush1.msra.mxu0 0.0
        %474 = vmatprep.subr.mxu0 0.0
        %475 = vmatpush1.msra.mxu0 0.0
        %476 = vmatprep.subr.mxu0 0.0
        %477 = vmatpush1.msra.mxu0 0.0
        %478 = vmatprep.subr.mxu0 0.0
        %479 = vmatpush1.msra.mxu0 0.0
        %480 = vmatprep.subr.mxu0 0.0
        %481 = vmatpush1.msra.mxu0 0.0
        %482 = vmatprep.subr.mxu0 0.0
        %483 = vmatpush1.msra.mxu0 0.0
        %484 = vmatprep.subr.mxu0 0.0
        %485 = vmatpush1.msra.mxu0 0.0
        %486 = vmatprep.subr.mxu0 0.0
        %487 = vmatpush1.msra.mxu0 0.0
        %488 = vmatprep.subr.mxu0 0.0
        %489 = vmatpush1.msra.mxu0 0.0
        %490 = vmatprep.subr.mxu0 0.0
        %491 = vmatpush1.msra.mxu0 0.0
        %492 = vmatprep.mubr.f32.mxu0 0.0
        %v493 = vand.u32 %v262, 4294901760
        %v494 = vsub.f32 %v262, %v493
        %495 = vmatmul.mubr.f32.gmra.mrb[0].mxu0 %v494
        %v496 = vpop.f32.mrb[0].mxu0
        %v497 = vadd.f32 %v420, %v496
        %v498 = vpop.f32.mrb[0].mxu0
        %v499 = vadd.f32 %v422, %v498
        %500 = vdwg.mxu0
        %v501 = vand.u32 %v259, 4294901760
        %502 = vmatprep.subr.mxu0 %v501
        %v503 = vand.u32 %v258, 4294901760
        %504 = vmatpush1.msra.mxu0 %v503
        %505 = vmatprep.subr.mxu0 0.0
        %506 = vmatpush1.msra.mxu0 0.0
        %507 = vmatprep.subr.mxu0 0.0
        %508 = vmatpush1.msra.mxu0 0.0
        %509 = vmatprep.subr.mxu0 0.0
        %510 = vmatpush1.msra.mxu0 0.0
        %511 = vmatprep.subr.mxu0 0.0
        %512 = vmatpush1.msra.mxu0 0.0
        %513 = vmatprep.subr.mxu0 0.0
        %514 = vmatpush1.msra.mxu0 0.0
        %515 = vmatprep.subr.mxu0 0.0
        %516 = vmatpush1.msra.mxu0 0.0
        %517 = vmatprep.subr.mxu0 0.0
        %518 = vmatpush1.msra.mxu0 0.0
        %519 = vmatprep.subr.mxu0 0.0
        %520 = vmatpush1.msra.mxu0 0.0
        %521 = vmatprep.subr.mxu0 0.0
        %522 = vmatpush1.msra.mxu0 0.0
        %523 = vmatprep.subr.mxu0 0.0
        %524 = vmatpush1.msra.mxu0 0.0
        %525 = vmatprep.subr.mxu0 0.0
        %526 = vmatpush1.msra.mxu0 0.0
        %527 = vmatprep.subr.mxu0 0.0
        %528 = vmatpush1.msra.mxu0 0.0
        %529 = vmatprep.subr.mxu0 0.0
        %530 = vmatpush1.msra.mxu0 0.0
        %531 = vmatprep.subr.mxu0 0.0
        %532 = vmatpush1.msra.mxu0 0.0
        %533 = vmatprep.subr.mxu0 0.0
        %534 = vmatpush1.msra.mxu0 0.0
        %535 = vmatprep.subr.mxu0 0.0
        %536 = vmatpush1.msra.mxu0 0.0
        %537 = vmatprep.subr.mxu0 0.0
        %538 = vmatpush1.msra.mxu0 0.0
        %539 = vmatprep.subr.mxu0 0.0
        %540 = vmatpush1.msra.mxu0 0.0
        %541 = vmatprep.subr.mxu0 0.0
        %542 = vmatpush1.msra.mxu0 0.0
        %543 = vmatprep.subr.mxu0 0.0
        %544 = vmatpush1.msra.mxu0 0.0
        %545 = vmatprep.subr.mxu0 0.0
        %546 = vmatpush1.msra.mxu0 0.0
        %547 = vmatprep.subr.mxu0 0.0
        %548 = vmatpush1.msra.mxu0 0.0
        %549 = vmatprep.subr.mxu0 0.0
        %550 = vmatpush1.msra.mxu0 0.0
        %551 = vmatprep.subr.mxu0 0.0
        %552 = vmatpush1.msra.mxu0 0.0
        %553 = vmatprep.subr.mxu0 0.0
        %554 = vmatpush1.msra.mxu0 0.0
        %555 = vmatprep.subr.mxu0 0.0
        %556 = vmatpush1.msra.mxu0 0.0
        %557 = vmatprep.subr.mxu0 0.0
        %558 = vmatpush1.msra.mxu0 0.0
        %559 = vmatprep.subr.mxu0 0.0
        %560 = vmatpush1.msra.mxu0 0.0
        %561 = vmatprep.subr.mxu0 0.0
        %562 = vmatpush1.msra.mxu0 0.0
        %563 = vmatprep.subr.mxu0 0.0
        %564 = vmatpush1.msra.mxu0 0.0
        %565 = vmatprep.subr.mxu0 0.0
        %566 = vmatpush1.msra.mxu0 0.0
        %567 = vmatprep.mubr.f32.mxu0 0.0
        %v568 = vand.u32 %v262, 4294901760
        %v569 = vsub.f32 %v262, %v568
        %v570 = vand.u32 %v569, 4294901760
        %571 = vmatmul.mubr.f32.gmra.mrb[0].mxu0 %v570
        %v572 = vpop.f32.mrb[0].mxu0
        %v573 = vadd.f32 %v497, %v572
        %v574 = vpop.f32.mrb[0].mxu0
        %v575 = vadd.f32 %v499, %v574
        %576 = vdwg.mxu0
        %v577 = vand.u32 %v259, 4294901760
        %v578 = vsub.f32 %v259, %v577
        %v579 = vand.u32 %v578, 4294901760
        %580 = vmatprep.subr.mxu0 %v579
        %v581 = vand.u32 %v258, 4294901760
        %v582 = vsub.f32 %v258, %v581
        %v583 = vand.u32 %v582, 4294901760
        %584 = vmatpush1.msra.mxu0 %v583
        %585 = vmatprep.subr.mxu0 0.0
        %586 = vmatpush1.msra.mxu0 0.0
        %587 = vmatprep.subr.mxu0 0.0
        %588 = vmatpush1.msra.mxu0 0.0
        %589 = vmatprep.subr.mxu0 0.0
        %590 = vmatpush1.msra.mxu0 0.0
        %591 = vmatprep.subr.mxu0 0.0
        %592 = vmatpush1.msra.mxu0 0.0
        %593 = vmatprep.subr.mxu0 0.0
        %594 = vmatpush1.msra.mxu0 0.0
        %595 = vmatprep.subr.mxu0 0.0
        %596 = vmatpush1.msra.mxu0 0.0
        %597 = vmatprep.subr.mxu0 0.0
        %598 = vmatpush1.msra.mxu0 0.0
        %599 = vmatprep.subr.mxu0 0.0
        %600 = vmatpush1.msra.mxu0 0.0
        %601 = vmatprep.subr.mxu0 0.0
        %602 = vmatpush1.msra.mxu0 0.0
        %603 = vmatprep.subr.mxu0 0.0
        %604 = vmatpush1.msra.mxu0 0.0
        %605 = vmatprep.subr.mxu0 0.0
        %606 = vmatpush1.msra.mxu0 0.0
        %607 = vmatprep.subr.mxu0 0.0
        %608 = vmatpush1.msra.mxu0 0.0
        %609 = vmatprep.subr.mxu0 0.0
        %610 = vmatpush1.msra.mxu0 0.0
        %611 = vmatprep.subr.mxu0 0.0
        %612 = vmatpush1.msra.mxu0 0.0
        %613 = vmatprep.subr.mxu0 0.0
        %614 = vmatpush1.msra.mxu0 0.0
        %615 = vmatprep.subr.mxu0 0.0
        %616 = vmatpush1.msra.mxu0 0.0
        %617 = vmatprep.subr.mxu0 0.0
        %618 = vmatpush1.msra.mxu0 0.0
        %619 = vmatprep.subr.mxu0 0.0
        %620 = vmatpush1.msra.mxu0 0.0
        %621 = vmatprep.subr.mxu0 0.0
        %622 = vmatpush1.msra.mxu0 0.0
        %623 = vmatprep.subr.mxu0 0.0
        %624 = vmatpush1.msra.mxu0 0.0
        %625 = vmatprep.subr.mxu0 0.0
        %626 = vmatpush1.msra.mxu0 0.0
        %627 = vmatprep.subr.mxu0 0.0
        %628 = vmatpush1.msra.mxu0 0.0
        %629 = vmatprep.subr.mxu0 0.0
        %630 = vmatpush1.msra.mxu0 0.0
        %631 = vmatprep.subr.mxu0 0.0
        %632 = vmatpush1.msra.mxu0 0.0
        %633 = vmatprep.subr.mxu0 0.0
        %634 = vmatpush1.msra.mxu0 0.0
        %635 = vmatprep.subr.mxu0 0.0
        %636 = vmatpush1.msra.mxu0 0.0
        %637 = vmatprep.subr.mxu0 0.0
        %638 = vmatpush1.msra.mxu0 0.0
        %639 = vmatprep.subr.mxu0 0.0
        %640 = vmatpush1.msra.mxu0 0.0
        %641 = vmatprep.subr.mxu0 0.0
        %642 = vmatpush1.msra.mxu0 0.0
        %643 = vmatprep.subr.mxu0 0.0
        %644 = vmatpush1.msra.mxu0 0.0
        %645 = vmatprep.subr.mxu0 0.0
        %646 = vmatpush1.msra.mxu0 0.0
        %647 = vmatprep.mubr.f32.mxu0 0.0
        %v648 = vand.u32 %v262, 4294901760
        %649 = vmatmul.mubr.f32.gmra.mrb[0].mxu0 %v648
        %v650 = vpop.f32.mrb[0].mxu0
        %v651 = vadd.f32 %v573, %v650
        %v652 = vpop.f32.mrb[0].mxu0
        %v653 = vadd.f32 %v575, %v652
        %654 = vdwg.mxu0
        %v655 = vand.u32 %v259, 4294901760
        %656 = vmatprep.subr.mxu0 %v655
        %v657 = vand.u32 %v258, 4294901760
        %658 = vmatpush1.msra.mxu0 %v657
        %659 = vmatprep.subr.mxu0 0.0
        %660 = vmatpush1.msra.mxu0 0.0
        %661 = vmatprep.subr.mxu0 0.0
        %662 = vmatpush1.msra.mxu0 0.0
        %663 = vmatprep.subr.mxu0 0.0
        %664 = vmatpush1.msra.mxu0 0.0
        %665 = vmatprep.subr.mxu0 0.0
        %666 = vmatpush1.msra.mxu0 0.0
        %667 = vmatprep.subr.mxu0 0.0
        %668 = vmatpush1.msra.mxu0 0.0
        %669 = vmatprep.subr.mxu0 0.0
        %670 = vmatpush1.msra.mxu0 0.0
        %671 = vmatprep.subr.mxu0 0.0
        %672 = vmatpush1.msra.mxu0 0.0
        %673 = vmatprep.subr.mxu0 0.0
        %674 = vmatpush1.msra.mxu0 0.0
        %675 = vmatprep.subr.mxu0 0.0
        %676 = vmatpush1.msra.mxu0 0.0
        %677 = vmatprep.subr.mxu0 0.0
        %678 = vmatpush1.msra.mxu0 0.0
        %679 = vmatprep.subr.mxu0 0.0
        %680 = vmatpush1.msra.mxu0 0.0
        %681 = vmatprep.subr.mxu0 0.0
        %682 = vmatpush1.msra.mxu0 0.0
        %683 = vmatprep.subr.mxu0 0.0
        %684 = vmatpush1.msra.mxu0 0.0
        %685 = vmatprep.subr.mxu0 0.0
        %686 = vmatpush1.msra.mxu0 0.0
        %687 = vmatprep.subr.mxu0 0.0
        %688 = vmatpush1.msra.mxu0 0.0
        %689 = vmatprep.subr.mxu0 0.0
        %690 = vmatpush1.msra.mxu0 0.0
        %691 = vmatprep.subr.mxu0 0.0
        %692 = vmatpush1.msra.mxu0 0.0
        %693 = vmatprep.subr.mxu0 0.0
        %694 = vmatpush1.msra.mxu0 0.0
        %695 = vmatprep.subr.mxu0 0.0
        %696 = vmatpush1.msra.mxu0 0.0
        %697 = vmatprep.subr.mxu0 0.0
        %698 = vmatpush1.msra.mxu0 0.0
        %699 = vmatprep.subr.mxu0 0.0
        %700 = vmatpush1.msra.mxu0 0.0
        %701 = vmatprep.subr.mxu0 0.0
        %702 = vmatpush1.msra.mxu0 0.0
        %703 = vmatprep.subr.mxu0 0.0
        %704 = vmatpush1.msra.mxu0 0.0
        %705 = vmatprep.subr.mxu0 0.0
        %706 = vmatpush1.msra.mxu0 0.0
        %707 = vmatprep.subr.mxu0 0.0
        %708 = vmatpush1.msra.mxu0 0.0
        %709 = vmatprep.subr.mxu0 0.0
        %710 = vmatpush1.msra.mxu0 0.0
        %711 = vmatprep.subr.mxu0 0.0
        %712 = vmatpush1.msra.mxu0 0.0
        %713 = vmatprep.subr.mxu0 0.0
        %714 = vmatpush1.msra.mxu0 0.0
        %715 = vmatprep.subr.mxu0 0.0
        %716 = vmatpush1.msra.mxu0 0.0
        %717 = vmatprep.subr.mxu0 0.0
        %718 = vmatpush1.msra.mxu0 0.0
        %719 = vmatprep.subr.mxu0 0.0
        %720 = vmatpush1.msra.mxu0 0.0
        %721 = vmatprep.mubr.f32.mxu0 0.0
        %v722 = vand.u32 %v262, 4294901760
        %723 = vmatmul.mubr.f32.gmra.mrb[0].mxu0 %v722
        %v724 = vpop.f32.mrb[0].mxu0
        %v725 = vadd.f32 %v651, %v724
        %v726 = vpop.f32.mrb[0].mxu0
        %v727 = vadd.f32 %v653, %v726
        %728 = vdwg.mxu0
        %v729 = vld [vmem:[%s249] sm:$0x3]
        %v730 = vld [vmem:[%s254] sm:$0x3]
        %v732 = vlaneseq
        %v733 = vshrl.u32 %v732, 7
        %v734 = vsub.s32 0, %v733
        %v735 = vrot.slane %v729, %v734
        %v736 = vlaneseq
        %v737 = vshrl.u32 %v736, 7
        %v738 = vsub.s32 1, %v737
        %v739 = vrot.slane %v729, %v738
        %v742 = vmul.f32 %v725, %v735
        %v743 = vmul.f32 %v727, %v739
        %v745 = vlaneseq
        %v746 = vshrl.u32 %v745, 7
        %v747 = vsub.s32 0, %v746
        %v748 = vrot.slane %v730, %v747
        %v749 = vlaneseq
        %v750 = vshrl.u32 %v749, 7
        %v751 = vsub.s32 1, %v750
        %v752 = vrot.slane %v730, %v751
        %v755 = vadd.f32 %v742, %v748
        %v756 = vadd.f32 %v743, %v752
        %757 = vst [vmem:[%s238] sm:$0xff] %v755
        %758 = vst [vmem:[%s238 + $0x8] sm:$0xff] %v756
        %s759 = sand.u32 %s141, 1
        %s760 = scalar_lea.sflag [#allocation3], %s759
        %s761 = sand.u32 %s141, 1
        %s762 = smul.addr %s761, 16
        %s763 = scalar_lea.vmem [#allocation2], %s762
        // Predicated region
        $region37: #{tpu_custom_call.1} parent=35 // pred_check
          %p764 = pneg %p151
        $region38: #{tpu_custom_call.1} parent=35 // pred_check_branch
          %766 = sbr.rel (%p764) target = $region40
        $region39: #{tpu_custom_call.1} parent=35 // pred_region
          %s767 = smul.u32 2, %s23
          %s769 = ssub.s32 256, 256
          %770 = vsyncadd %s760, %s769
          %s771 = smul.addr %s22, 2
          %s772 = sadd.s32 %s767, %s771
          %s773 = smul.addr %s772, 128
          %s774 = scalar_lea.hbm %s4, %s773
          %s776 = sshll.u32 %s763, 4
          %s777 = int_to_ptr.vmem [resolvable:$true] %s776
          %779 = dma.vmem_to_hbm [thread:$0]  %s777, 256, %s774, %s760
        $region40: #{tpu_custom_call.1} parent=35 // pred_fallthru
          _
      $region36: #{tpu_custom_call.1} parent=5 // pred_fallthru
        _
      %p780 = scmp.le.s32.totalorder 2, %s13
      // Predicated region
      $region41: #{tpu_custom_call.1} parent=5 // pred_check
        %p781 = pneg %p780
      $region42: #{tpu_custom_call.1} parent=5 // pred_check_branch
        %783 = sbr.rel (%p781) target = $region44
      $region43: #{tpu_custom_call.1} parent=5 // pred_region
        %s784 = ssub.s32 %s13, 2
        // Predicated region
        $region45: #{tpu_custom_call.1} parent=43 // pred_check
          %p785 = pneg %p157
        $region46: #{tpu_custom_call.1} parent=43 // pred_check_branch
          %787 = sbr.rel (%p785) target = $region48
        $region47: #{tpu_custom_call.1} parent=43 // pred_region
          %s788 = sand.u32 %s142, 1
          %s789 = scalar_lea.sflag [#allocation3], %s788
          %s790 = sand.u32 %s142, 1
          %s791 = smul.addr %s790, 16
          %s792 = scalar_lea.vmem [#allocation2], %s791
          %793 = dma.done %s789, 256
        $region48: #{tpu_custom_call.1} parent=43 // pred_fallthru
          _
      $region44: #{tpu_custom_call.1} parent=5 // pred_fallthru
        _
    $region6: #{tpu_custom_call.1} parent=1 // loop_footer
      %s17 = sadd.s32 1, %s13
    $region7: #{tpu_custom_call.1} parent=1 // loop_footer_branch
      %12 = sbr.rel target = $region3
    $region8: #{tpu_custom_call.1} parent=1 // loop_exit
      _
    %794 = vsyncpa [#allocation3], 1
    %s795 = scalar_lea.sflag [#allocation3], 1
    %796 = vsyncpa %s795, 1

</llo_original>
